<compile_context>
chip_gen: v5e
topology: v5e:2x2
jax: 0.10.0
libtpu: 0.0.40
codegen_flags: <defaults>
</compile_context>

<pallas_src>
import jax
import jax.numpy as jnp
from jax.experimental import pallas as pl
from jax.experimental.pallas import tpu as pltpu

EPS = 1e-5
OPENAI_MEAN = (0.48145466, 0.4578275, 0.40821073)
OPENAI_STD = (0.26862954, 0.26130258, 0.27577711)
LANE = 128


def _round_up(x, m):
    return (x + m - 1) // m * m


# ----------------------------------------------------------------------------
# Kernel helpers (elementwise math in f32, matmuls in bf16 on the MXU)
# ----------------------------------------------------------------------------
def _layernorm(x, w, b):
    mu = jnp.mean(x, axis=-1, keepdims=True)
    xc = x - mu
    var = jnp.mean(xc * xc, axis=-1, keepdims=True)
    return xc * jax.lax.rsqrt(var + EPS) * w + b


def _quick_gelu(x):
    # OpenAI CLIP uses QuickGELU: x * sigmoid(1.702 * x)
    return x * jax.nn.sigmoid(1.702 * x)


def _bf16_dot(a, w):
    # bf16 x bf16 on the MXU, f32 accumulate.
    return jnp.dot(a.astype(jnp.bfloat16), w, preferred_element_type=jnp.float32)


# ----------------------------------------------------------------------------
# Fused MaskClip kernel:
#   patch-embed (OpenAI normalize folded into weights; conv bias folded into
#   pos_emb) -> extract_v of resblocks[-1] (value path folded into one matmul)
#   -> ln_post -> decode head (visual proj + cosine sim w/ normalized text)
#
# vecs_ref row layout (8, C) f32:
#   0 ln1_w  1 ln1_b  2 b_vo  3 ln2_w  4 ln2_b  5 b_cproj  6 lnp_w  7 lnp_b
# ----------------------------------------------------------------------------
def _maskclip_kernel(
    patch_ref, pos_ref,
    pw_ref, wvo_ref, wfc_ref, bfc_ref, wcp_ref, vproj_ref, txt_ref, vecs_ref,
    o_ref,
):
    ln1w = vecs_ref[0:1, :]
    ln1b = vecs_ref[1:2, :]
    b_vo = vecs_ref[2:3, :]
    ln2w = vecs_ref[3:4, :]
    ln2b = vecs_ref[4:5, :]
    b_cp = vecs_ref[5:6, :]
    lnpw = vecs_ref[6:7, :]
    lnpb = vecs_ref[7:8, :]

    # patch embedding; conv bias is pre-folded into pos_ref
    x = _bf16_dot(patch_ref[...], pw_ref[...]) + pos_ref[...]
    # TODO(synk): pretrained resblocks[:-1] + ln_pre omitted (identity stub).

    # extract_v of the last resblock: q/k branches are dead code, and
    # in_proj(v rows) @ out_proj is folded into one (C, C) matmul (exact fold:
    # no nonlinearity between them)
    y = _layernorm(x, ln1w, ln1b)
    v = _bf16_dot(y, wvo_ref[...]) + b_vo + x               # v = out(in_v(ln1(x))) + x

    h = _layernorm(v, ln2w, ln2b)
    h = _quick_gelu(_bf16_dot(h, wfc_ref[...]) + bfc_ref[...])
    h = _bf16_dot(h, wcp_ref[...]) + b_cp
    v = v + h                                               # v += mlp(ln_2(v))

    # ln_post
    v = _layernorm(v, lnpw, lnpb)

    # decode head: visual proj -> L2 normalize -> cosine sim with pre-normalized
    # text embeddings; lane-dense (tm, 128) bf16 store
    f = _bf16_dot(v, vproj_ref[...])
    f = f * jax.lax.rsqrt(jnp.sum(f * f, axis=-1, keepdims=True) + 1e-12)
    o_ref[...] = _bf16_dot(f, txt_ref[...]).astype(o_ref.dtype)


# ----------------------------------------------------------------------------
# Parameter init (synthetic "checkpoint", PyTorch-style layout)
# ----------------------------------------------------------------------------
def init_params(key, *, C, patch, img_c, hw, D, K):
    ks = jax.random.split(key, 16)
    f = lambda k, shape, s=0.02: (s * jax.random.normal(k, shape)).astype(jnp.float32)
    cin = img_c * patch * patch
    return dict(
        patch_w=f(ks[0], (cin, C)),
        patch_b=f(ks[1], (1, C)),
        pos_emb=f(ks[2], (hw + 1, C)),        # row 0 = cls token (dead code here)
        ln1_w=jnp.ones((1, C), jnp.float32), ln1_b=jnp.zeros((1, C), jnp.float32),
        w_in_v=f(ks[3], (C, C)), b_in_v=f(ks[4], (1, C)),   # v-rows of attn.in_proj
        w_out=f(ks[5], (C, C)), b_out=f(ks[6], (1, C)),     # attn.out_proj
        ln2_w=jnp.ones((1, C), jnp.float32), ln2_b=jnp.zeros((1, C), jnp.float32),
        w_fc=f(ks[7], (C, 4 * C)), b_fc=f(ks[8], (1, 4 * C)),
        w_cproj=f(ks[9], (4 * C, C)), b_cproj=f(ks[10], (1, C)),
        lnp_w=jnp.ones((1, C), jnp.float32), lnp_b=jnp.zeros((1, C), jnp.float32),
        visual_proj=f(ks[11], (C, D)),
        text_emb=f(ks[12], (K, D)),
    )


# ----------------------------------------------------------------------------
# Trace-time weight prep: fold OpenAI normalization into the patch-embed
# weights, fold conv bias into pos_emb, fold the value path (in_v @ out), pad
# lane dims only where needed, bundle bias/LN vectors, cast matmul weights bf16.
# ----------------------------------------------------------------------------
def prepare_params(raw, *, patch, img_c):
    p2 = patch * patch
    cin = img_c * p2
    mean = jnp.asarray(OPENAI_MEAN, jnp.float32)
    std = jnp.asarray(OPENAI_STD, jnp.float32)
    inv_std = jnp.repeat(1.0 / std, p2)                    # per patch_w row (c-major)
    shift = jnp.repeat(-mean / std, p2)
    pw = raw["patch_w"] * inv_std[:, None]
    pb = raw["patch_b"] + shift @ raw["patch_w"]           # (1, C)
    if cin % LANE != 0:
        # pad the contraction dim only when it is not already lane-aligned
        pw = jnp.pad(pw, ((0, _round_up(cin, LANE) - cin), (0, 0)))

    # fold the conv bias into the patch-token positional embedding (cls row is
    # dead code: sliced off by v[:, 1:], no cross-token attention computed here)
    pos = raw["pos_emb"][1:] + pb                          # (hw, C) f32

    # exact fold of the value path (no nonlinearity in between); f32 product
    # before the bf16 cast keeps the extra rounding error bounded
    w_vo = raw["w_in_v"] @ raw["w_out"]                    # (C, C) f32
    b_vo = raw["b_in_v"] @ raw["w_out"] + raw["b_out"]     # (1, C) f32

    # pre-normalized, transposed, lane-padded text embeddings
    txt = raw["text_emb"]
    txt = txt * jax.lax.rsqrt(jnp.sum(txt * txt, axis=-1, keepdims=True) + 1e-12)
    K = txt.shape[0]
    txt_t = jnp.pad(txt.T, ((0, 0), (0, _round_up(K, LANE) - K)))   # (D, Kp)

    # bundle the eight (1, C) vectors into one (8, C) operand
    vecs = jnp.concatenate(
        [raw["ln1_w"], raw["ln1_b"], b_vo,
         raw["ln2_w"], raw["ln2_b"], raw["b_cproj"],
         raw["lnp_w"], raw["lnp_b"]], axis=0)              # (8, C) f32

    bf16 = lambda a: a.astype(jnp.bfloat16)
    return dict(
        patch_w=bf16(pw),
        pos_emb=pos,
        w_vo=bf16(w_vo),
        w_fc=bf16(raw["w_fc"]), b_fc=raw["b_fc"],
        w_cproj=bf16(raw["w_cproj"]),
        visual_proj=bf16(raw["visual_proj"]),
        txt_t=bf16(txt_t),
        vecs=vecs,
    )


# ----------------------------------------------------------------------------
# Tiling / capability helpers
# ----------------------------------------------------------------------------
def _pick_tm(hw, tm_max):
    """Row-tile size: multiple of 16 (bf16 sublane packing), <=10% dead rows."""
    tm_max = max(16, (tm_max // 16) * 16)
    if hw <= tm_max:
        return _round_up(hw, 16)              # one tile per image, <=15 dead rows
    for t in range(tm_max, 15, -16):          # largest tile with small padding
        if (_round_up(hw, t) - hw) * 10 <= hw:
            return t
    return 16


def _probe_buffered_support():
    """True iff pipeline_mode=pl.Buffered(1) works for constant-index weight
    BlockSpecs inside pallas_call on this jax/libtpu (v7x VMEM saver)."""
    try:
        w_spec = pl.BlockSpec((8, 128), lambda i: (0, 0), pipeline_mode=pl.Buffered(1))

        def k(x_ref, w_ref, o_ref):
            o_ref[...] = x_ref[...] + w_ref[...]

        out = pl.pallas_call(
            k,
            out_shape=jax.ShapeDtypeStruct((16, 128), jnp.float32),
            grid=(2,),
            in_specs=[pl.BlockSpec((8, 128), lambda i: (i, 0)), w_spec],
            out_specs=pl.BlockSpec((8, 128), lambda i: (i, 0)),
        )(jnp.zeros((16, 128), jnp.float32), jnp.ones((8, 128), jnp.float32))
        jax.block_until_ready(out)
        return True
    except Exception:
        return False


# ----------------------------------------------------------------------------
# MaskClip forward
# ----------------------------------------------------------------------------
def maskclip_forward(params, inputs, *, patch_size, num_classes, tm=512,
                     single_buffer_weights=False):
    B, Cimg, H, W = inputs.shape
    p = patch_size
    h, w = H // p, W // p
    hw = h * w
    C = params["pos_emb"].shape[-1]
    cin = Cimg * p * p
    cin_p = params["patch_w"].shape[0]
    Kp = params["txt_t"].shape[-1]

    if params["pos_emb"].shape[0] != hw:
        # TODO(synk): bicubic resize_pos_embed for mismatched input sizes.
        raise NotImplementedError("input grid does not match pos_emb grid")

    # --- host-side patchify (conv k=stride=patch == matmul over flat patches);
    #     OpenAI normalization is already folded into patch_w / pos_emb -------
    patches = (
        inputs.reshape(B, Cimg, h, p, w, p)
        .transpose(0, 2, 4, 1, 3, 5)
        .reshape(B, hw, cin)
    )
    if cin_p != cin:
        patches = jnp.pad(patches, ((0, 0), (0, 0), (0, cin_p - cin)))

    # --- row tiling: grid = (batch, row-tiles-per-image) ----------------------
    tm = _pick_tm(hw, tm)
    if B * (_round_up(hw, tm) // tm) < 2 and hw >= 32:
        # guarantee >=2 grid steps so the "parallel" axes can use both v7x TCs
        tm = max(16, _round_up(-(-hw // 2), 16))
    hw_pad = _round_up(hw, tm)
    nj = hw_pad // tm

    pos = params["pos_emb"]                                 # (hw, C) f32
    if hw_pad != hw:
        patches = jnp.pad(patches, ((0, 0), (0, hw_pad - hw), (0, 0)))
        pos = jnp.pad(pos, ((0, hw_pad - hw), (0, 0)))
    patches = patches.reshape(B * hw_pad, cin_p).astype(jnp.bfloat16)

    weight_args = (
        params["patch_w"], params["w_vo"], params["w_fc"], params["b_fc"],
        params["w_cproj"], params["visual_proj"], params["txt_t"], params["vecs"],
    )

    # weights: whole-array blocks, constant index_map -> VMEM-resident.
    # Single-buffer them (pl.Buffered(1)) when supported to halve weight VMEM.
    if single_buffer_weights:
        w_spec = lambda a: pl.BlockSpec(a.shape, lambda b, j: (0, 0),
                                        pipeline_mode=pl.Buffered(1))
    else:
        w_spec = lambda a: pl.BlockSpec(a.shape, lambda b, j: (0, 0))

    in_specs = [
        pl.BlockSpec((tm, cin_p), lambda b, j: (b * nj + j, 0)),  # patch rows
        pl.BlockSpec((tm, C), lambda b, j: (j, 0)),               # per-image pos rows
    ] + [w_spec(a) for a in weight_args]

    # VMEM budget from actual operand sizes, capped by per-generation capacity
    w_bytes = sum(int(a.size) * a.dtype.itemsize for a in weight_args)
    act_bytes = (2 * tm * (cin_p * 2 + C * 4)      # double-buffered input tiles
                 + 2 * tm * Kp * 2                 # double-buffered output tile
                 + 4 * tm * 4 * C * 4)             # f32 intermediates (rough)
    need = (1 if single_buffer_weights else 2) * w_bytes + act_bytes
    try:
        cap = int(pltpu.get_tpu_info().vmem_capacity_bytes)
    except Exception:
        cap = 64 * 1024 * 1024                     # v7x physical; safe lower bound
    vmem_limit = max(32 * 1024 * 1024,
                     min(int(1.5 * need) + (4 << 20), int(0.9 * cap)))

    logits = pl.pallas_call(
        _maskclip_kernel,
        out_shape=jax.ShapeDtypeStruct((B * hw_pad, Kp), jnp.bfloat16),
        grid=(B, nj),
        in_specs=in_specs,
        out_specs=pl.BlockSpec((tm, Kp), lambda b, j: (b * nj + j, 0)),
        compiler_params=pltpu.CompilerParams(
            dimension_semantics=("parallel", "parallel"),  # v7x: shard on 2 TCs
            vmem_limit_bytes=vmem_limit,
        ),
    )(patches, pos, *weight_args)

    logits = logits.reshape(B, hw_pad, Kp)[:, :hw, :num_classes]   # drop padding
    seg_logits = (logits.reshape(B, h, w, num_classes)
                        .transpose(0, 3, 1, 2)
                        .astype(jnp.float32))
    return seg_logits                                              # (B, K, h, w)


if __name__ == "__main__":
    key = jax.random.PRNGKey(0)
    pkey, ikey = jax.random.split(key)

    B, IMG_C, IMG_HW, PATCH = 2, 3, 32, 8
    h = w = IMG_HW // PATCH
    C, D, K = 128, 128, 8        # lane-aligned hidden / proj dims; K padded in-kernel

    raw = init_params(pkey, C=C, patch=PATCH, img_c=IMG_C, hw=h * w, D=D, K=K)
    params = prepare_params(raw, patch=PATCH, img_c=IMG_C)
    inputs = jax.random.uniform(ikey, (B, IMG_C, IMG_HW, IMG_HW), dtype=jnp.float32)

    # probe (outside jit) whether single-buffered weight BlockSpecs are supported
    single_buffer = _probe_buffered_support()

    fwd = jax.jit(
        maskclip_forward,
        static_argnames=("patch_size", "num_classes", "tm", "single_buffer_weights"),
    )
    out = fwd(params, inputs, patch_size=PATCH, num_classes=K,
              single_buffer_weights=single_buffer)
    jax.block_until_ready(out)
    assert out.shape == (B, K, h, w), out.shape
    assert bool(jnp.isfinite(out).all())
    print("KERNEL_OK")
</pallas_src>

<mosaic_0001>
module attributes {stable_mosaic.version = 11 : i64} {
  func.func @k(%arg0: i32, %arg1: memref<8x128xf32, #tpu.memory_space<vmem>>, %arg2: memref<8x128xf32, #tpu.memory_space<vmem>>, %arg3: memref<8x128xf32, #tpu.memory_space<vmem>>) attributes {dimension_semantics = [#tpu.dimension_semantics<arbitrary>], iteration_bounds = array<i64: 2>, scalar_prefetch = 0 : i64, scratch_operands = 0 : i64, tpu.core_type = #tpu.core_type<tc>, window_params = [{transform_indices = @transform_0, window_bounds = array<i64: 8, 128>}, {pipeline_mode = #tpu.pipeline_mode<synchronous>, transform_indices = @transform_1, window_bounds = array<i64: 8, 128>}, {transform_indices = @transform_2, window_bounds = array<i64: 8, 128>}]} {
    %c0 = arith.constant 0 : index
    %c0_0 = arith.constant 0 : index
    %0 = vector.load %arg1[%c0, %c0_0] : memref<8x128xf32, #tpu.memory_space<vmem>>, vector<8x128xf32>
    %c0_1 = arith.constant 0 : index
    %c0_2 = arith.constant 0 : index
    %1 = vector.load %arg2[%c0_1, %c0_2] : memref<8x128xf32, #tpu.memory_space<vmem>>, vector<8x128xf32>
    %2 = arith.addf %0, %1 : vector<8x128xf32>
    %c0_3 = arith.constant 0 : index
    %c0_4 = arith.constant 0 : index
    %3 = vector.load %arg3[%c0_3, %c0_4] : memref<8x128xf32, #tpu.memory_space<vmem>>, vector<8x128xf32>
    tpu.vector_store %arg3[%c0_3, %c0_4], %2 {strides = array<i32>} : memref<8x128xf32, #tpu.memory_space<vmem>>, vector<8x128xf32>,
    return
  }
  func.func @transform_0(%arg0: i32) -> (i32, i32) {
    %c0_i32 = arith.constant 0 : i32
    %c0_i32_0 = arith.constant 0 : i32
    return %arg0, %c0_i32 : i32, i32
  }
  func.func @transform_1(%arg0: i32) -> (i32, i32) {
    %c0_i32 = arith.constant 0 : i32
    %c0_i32_0 = arith.constant 0 : i32
    %c0_i32_1 = arith.constant 0 : i32
    return %c0_i32, %c0_i32_0 : i32, i32
  }
  func.func @transform_2(%arg0: i32) -> (i32, i32) {
    %c0_i32 = arith.constant 0 : i32
    %c0_i32_0 = arith.constant 0 : i32
    return %arg0, %c0_i32 : i32, i32
  }
}

module attributes {stable_mosaic.version = 11 : i64} {
  func.func @_maskclip_kernel(%arg0: i32, %arg1: i32, %arg2: memref<16x256xbf16, #tpu.memory_space<vmem>>, %arg3: memref<16x128xf32, #tpu.memory_space<vmem>>, %arg4: memref<256x128xbf16, #tpu.memory_space<vmem>>, %arg5: memref<128x128xbf16, #tpu.memory_space<vmem>>, %arg6: memref<128x512xbf16, #tpu.memory_space<vmem>>, %arg7: memref<1x512xf32, #tpu.memory_space<vmem>>, %arg8: memref<512x128xbf16, #tpu.memory_space<vmem>>, %arg9: memref<128x128xbf16, #tpu.memory_space<vmem>>, %arg10: memref<128x128xbf16, #tpu.memory_space<vmem>>, %arg11: memref<8x128xf32, #tpu.memory_space<vmem>>, %arg12: memref<16x128xbf16, #tpu.memory_space<vmem>>) attributes {dimension_semantics = [#tpu.dimension_semantics<parallel>, #tpu.dimension_semantics<parallel>], iteration_bounds = array<i64: 2, 1>, scalar_prefetch = 0 : i64, scratch_operands = 0 : i64, tpu.core_type = #tpu.core_type<tc>, window_params = [{transform_indices = @transform_0, window_bounds = array<i64: 16, 256>}, {transform_indices = @transform_1, window_bounds = array<i64: 16, 128>}, {pipeline_mode = #tpu.pipeline_mode<synchronous>, transform_indices = @transform_2, window_bounds = array<i64: 256, 128>}, {pipeline_mode = #tpu.pipeline_mode<synchronous>, transform_indices = @transform_3, window_bounds = array<i64: 128, 128>}, {pipeline_mode = #tpu.pipeline_mode<synchronous>, transform_indices = @transform_4, window_bounds = array<i64: 128, 512>}, {pipeline_mode = #tpu.pipeline_mode<synchronous>, transform_indices = @transform_5, window_bounds = array<i64: 1, 512>}, {pipeline_mode = #tpu.pipeline_mode<synchronous>, transform_indices = @transform_6, window_bounds = array<i64: 512, 128>}, {pipeline_mode = #tpu.pipeline_mode<synchronous>, transform_indices = @transform_7, window_bounds = array<i64: 128, 128>}, {pipeline_mode = #tpu.pipeline_mode<synchronous>, transform_indices = @transform_8, window_bounds = array<i64: 128, 128>}, {pipeline_mode = #tpu.pipeline_mode<synchronous>, transform_indices = @transform_9, window_bounds = array<i64: 8, 128>}, {transform_indices = @transform_10, window_bounds = array<i64: 16, 128>}]} {
    %c0 = arith.constant 0 : index
    %c0_0 = arith.constant 0 : index
    %0 = vector.load %arg11[%c0, %c0_0] : memref<8x128xf32, #tpu.memory_space<vmem>>, vector<1x128xf32>
    %c1 = arith.constant 1 : index
    %c0_1 = arith.constant 0 : index
    %1 = vector.load %arg11[%c1, %c0_1] : memref<8x128xf32, #tpu.memory_space<vmem>>, vector<1x128xf32>
    %c2 = arith.constant 2 : index
    %c0_2 = arith.constant 0 : index
    %2 = vector.load %arg11[%c2, %c0_2] : memref<8x128xf32, #tpu.memory_space<vmem>>, vector<1x128xf32>
    %c3 = arith.constant 3 : index
    %c0_3 = arith.constant 0 : index
    %3 = vector.load %arg11[%c3, %c0_3] : memref<8x128xf32, #tpu.memory_space<vmem>>, vector<1x128xf32>
    %c4 = arith.constant 4 : index
    %c0_4 = arith.constant 0 : index
    %4 = vector.load %arg11[%c4, %c0_4] : memref<8x128xf32, #tpu.memory_space<vmem>>, vector<1x128xf32>
    %c5 = arith.constant 5 : index
    %c0_5 = arith.constant 0 : index
    %5 = vector.load %arg11[%c5, %c0_5] : memref<8x128xf32, #tpu.memory_space<vmem>>, vector<1x128xf32>
    %c6 = arith.constant 6 : index
    %c0_6 = arith.constant 0 : index
    %6 = vector.load %arg11[%c6, %c0_6] : memref<8x128xf32, #tpu.memory_space<vmem>>, vector<1x128xf32>
    %c7 = arith.constant 7 : index
    %c0_7 = arith.constant 0 : index
    %7 = vector.load %arg11[%c7, %c0_7] : memref<8x128xf32, #tpu.memory_space<vmem>>, vector<1x128xf32>
    %c0_8 = arith.constant 0 : index
    %c0_9 = arith.constant 0 : index
    %8 = vector.load %arg2[%c0_8, %c0_9] : memref<16x256xbf16, #tpu.memory_space<vmem>>, vector<16x256xbf16>
    %c0_10 = arith.constant 0 : index
    %c0_11 = arith.constant 0 : index
    %9 = vector.load %arg4[%c0_10, %c0_11] : memref<256x128xbf16, #tpu.memory_space<vmem>>, vector<256x128xbf16>
    %cst = arith.constant dense<0.000000e+00> : vector<16x128xf32>
    %10 = tpu.matmul %8, %9, %cst {dimension_numbers = #tpu.dot_dimension_numbers<[1], [0], [0], [1], [0, 0, 1, 1], [], []>} : vector<16x256xbf16>, vector<256x128xbf16>, vector<16x128xf32> -> vector<16x128xf32>
    %c0_12 = arith.constant 0 : index
    %c0_13 = arith.constant 0 : index
    %11 = vector.load %arg3[%c0_12, %c0_13] : memref<16x128xf32, #tpu.memory_space<vmem>>, vector<16x128xf32>
    %12 = arith.addf %10, %11 : vector<16x128xf32>
    %cst_14 = arith.constant dense<0.000000e+00> : vector<16xf32>
    %13 = vector.multi_reduction <add>, %12, %cst_14 [1] : vector<16x128xf32> to vector<16xf32>
    %14 = vector.shape_cast %13 : vector<16xf32> to vector<16x1xf32>
    %cst_15 = arith.constant 1.280000e+02 : f32
    %15 = vector.broadcast %cst_15 : f32 to vector<16x1xf32>
    %16 = arith.divf %14, %15 : vector<16x1xf32>
    %17 = vector.broadcast %16 : vector<16x1xf32> to vector<16x128xf32>
    %18 = arith.subf %12, %17 : vector<16x128xf32>
    %19 = arith.mulf %18, %18 : vector<16x128xf32>
    %cst_16 = arith.constant dense<0.000000e+00> : vector<16xf32>
    %20 = vector.multi_reduction <add>, %19, %cst_16 [1] : vector<16x128xf32> to vector<16xf32>
    %21 = vector.shape_cast %20 : vector<16xf32> to vector<16x1xf32>
    %cst_17 = arith.constant 1.280000e+02 : f32
    %22 = vector.broadcast %cst_17 : f32 to vector<16x1xf32>
    %23 = arith.divf %21, %22 : vector<16x1xf32>
    %cst_18 = arith.constant 9.99999974E-6 : f32
    %24 = vector.broadcast %cst_18 : f32 to vector<16x1xf32>
    %25 = arith.addf %23, %24 : vector<16x1xf32>
    %26 = math.rsqrt %25 : vector<16x1xf32>
    %27 = vector.broadcast %26 : vector<16x1xf32> to vector<16x128xf32>
    %28 = arith.mulf %18, %27 : vector<16x128xf32>
    %29 = vector.broadcast %0 : vector<1x128xf32> to vector<16x128xf32>
    %30 = arith.mulf %28, %29 : vector<16x128xf32>
    %31 = vector.broadcast %1 : vector<1x128xf32> to vector<16x128xf32>
    %32 = arith.addf %30, %31 : vector<16x128xf32>
    %c0_19 = arith.constant 0 : index
    %c0_20 = arith.constant 0 : index
    %33 = vector.load %arg5[%c0_19, %c0_20] : memref<128x128xbf16, #tpu.memory_space<vmem>>, vector<128x128xbf16>
    %34 = arith.truncf %32 : vector<16x128xf32> to vector<16x128xbf16>
    %cst_21 = arith.constant dense<0.000000e+00> : vector<16x128xf32>
    %35 = tpu.matmul %34, %33, %cst_21 {dimension_numbers = #tpu.dot_dimension_numbers<[1], [0], [0], [1], [0, 0, 1, 1], [], []>} : vector<16x128xbf16>, vector<128x128xbf16>, vector<16x128xf32> -> vector<16x128xf32>
    %36 = vector.broadcast %2 : vector<1x128xf32> to vector<16x128xf32>
    %37 = arith.addf %35, %36 : vector<16x128xf32>
    %38 = arith.addf %37, %12 : vector<16x128xf32>
    %cst_22 = arith.constant dense<0.000000e+00> : vector<16xf32>
    %39 = vector.multi_reduction <add>, %38, %cst_22 [1] : vector<16x128xf32> to vector<16xf32>
    %40 = vector.shape_cast %39 : vector<16xf32> to vector<16x1xf32>
    %cst_23 = arith.constant 1.280000e+02 : f32
    %41 = vector.broadcast %cst_23 : f32 to vector<16x1xf32>
    %42 = arith.divf %40, %41 : vector<16x1xf32>
    %43 = vector.broadcast %42 : vector<16x1xf32> to vector<16x128xf32>
    %44 = arith.subf %38, %43 : vector<16x128xf32>
    %45 = arith.mulf %44, %44 : vector<16x128xf32>
    %cst_24 = arith.constant dense<0.000000e+00> : vector<16xf32>
    %46 = vector.multi_reduction <add>, %45, %cst_24 [1] : vector<16x128xf32> to vector<16xf32>
    %47 = vector.shape_cast %46 : vector<16xf32> to vector<16x1xf32>
    %cst_25 = arith.constant 1.280000e+02 : f32
    %48 = vector.broadcast %cst_25 : f32 to vector<16x1xf32>
    %49 = arith.divf %47, %48 : vector<16x1xf32>
    %cst_26 = arith.constant 9.99999974E-6 : f32
    %50 = vector.broadcast %cst_26 : f32 to vector<16x1xf32>
    %51 = arith.addf %49, %50 : vector<16x1xf32>
    %52 = math.rsqrt %51 : vector<16x1xf32>
    %53 = vector.broadcast %52 : vector<16x1xf32> to vector<16x128xf32>
    %54 = arith.mulf %44, %53 : vector<16x128xf32>
    %55 = vector.broadcast %3 : vector<1x128xf32> to vector<16x128xf32>
    %56 = arith.mulf %54, %55 : vector<16x128xf32>
    %57 = vector.broadcast %4 : vector<1x128xf32> to vector<16x128xf32>
    %58 = arith.addf %56, %57 : vector<16x128xf32>
    %c0_27 = arith.constant 0 : index
    %c0_28 = arith.constant 0 : index
    %59 = vector.load %arg6[%c0_27, %c0_28] : memref<128x512xbf16, #tpu.memory_space<vmem>>, vector<128x512xbf16>
    %60 = arith.truncf %58 : vector<16x128xf32> to vector<16x128xbf16>
    %cst_29 = arith.constant dense<0.000000e+00> : vector<16x512xf32>
    %61 = tpu.matmul %60, %59, %cst_29 {dimension_numbers = #tpu.dot_dimension_numbers<[1], [0], [0], [1], [0, 0, 1, 1], [], []>} : vector<16x128xbf16>, vector<128x512xbf16>, vector<16x512xf32> -> vector<16x512xf32>
    %c0_30 = arith.constant 0 : index
    %c0_31 = arith.constant 0 : index
    %62 = vector.load %arg7[%c0_30, %c0_31] : memref<1x512xf32, #tpu.memory_space<vmem>>, vector<1x512xf32>
    %63 = vector.broadcast %62 : vector<1x512xf32> to vector<16x512xf32>
    %64 = arith.addf %61, %63 : vector<16x512xf32>
    %cst_32 = arith.constant 1.702000e+00 : f32
    %65 = vector.broadcast %cst_32 : f32 to vector<16x512xf32>
    %66 = arith.mulf %65, %64 : vector<16x512xf32>
    %67 = arith.negf %66 : vector<16x512xf32>
    %68 = math.exp %67 : vector<16x512xf32>
    %cst_33 = arith.constant 1.000000e+00 : f32
    %69 = vector.broadcast %cst_33 : f32 to vector<16x512xf32>
    %70 = arith.addf %69, %68 : vector<16x512xf32>
    %71 = arith.divf %69, %70 : vector<16x512xf32>
    %72 = arith.mulf %64, %71 : vector<16x512xf32>
    %c0_34 = arith.constant 0 : index
    %c0_35 = arith.constant 0 : index
    %73 = vector.load %arg8[%c0_34, %c0_35] : memref<512x128xbf16, #tpu.memory_space<vmem>>, vector<512x128xbf16>
    %74 = arith.truncf %72 : vector<16x512xf32> to vector<16x512xbf16>
    %cst_36 = arith.constant dense<0.000000e+00> : vector<16x128xf32>
    %75 = tpu.matmul %74, %73, %cst_36 {dimension_numbers = #tpu.dot_dimension_numbers<[1], [0], [0], [1], [0, 0, 1, 1], [], []>} : vector<16x512xbf16>, vector<512x128xbf16>, vector<16x128xf32> -> vector<16x128xf32>
    %76 = vector.broadcast %5 : vector<1x128xf32> to vector<16x128xf32>
    %77 = arith.addf %75, %76 : vector<16x128xf32>
    %78 = arith.addf %38, %77 : vector<16x128xf32>
    %cst_37 = arith.constant dense<0.000000e+00> : vector<16xf32>
    %79 = vector.multi_reduction <add>, %78, %cst_37 [1] : vector<16x128xf32> to vector<16xf32>
    %80 = vector.shape_cast %79 : vector<16xf32> to vector<16x1xf32>
    %cst_38 = arith.constant 1.280000e+02 : f32
    %81 = vector.broadcast %cst_38 : f32 to vector<16x1xf32>
    %82 = arith.divf %80, %81 : vector<16x1xf32>
    %83 = vector.broadcast %82 : vector<16x1xf32> to vector<16x128xf32>
    %84 = arith.subf %78, %83 : vector<16x128xf32>
    %85 = arith.mulf %84, %84 : vector<16x128xf32>
    %cst_39 = arith.constant dense<0.000000e+00> : vector<16xf32>
    %86 = vector.multi_reduction <add>, %85, %cst_39 [1] : vector<16x128xf32> to vector<16xf32>
    %87 = vector.shape_cast %86 : vector<16xf32> to vector<16x1xf32>
    %cst_40 = arith.constant 1.280000e+02 : f32
    %88 = vector.broadcast %cst_40 : f32 to vector<16x1xf32>
    %89 = arith.divf %87, %88 : vector<16x1xf32>
    %cst_41 = arith.constant 9.99999974E-6 : f32
    %90 = vector.broadcast %cst_41 : f32 to vector<16x1xf32>
    %91 = arith.addf %89, %90 : vector<16x1xf32>
    %92 = math.rsqrt %91 : vector<16x1xf32>
    %93 = vector.broadcast %92 : vector<16x1xf32> to vector<16x128xf32>
    %94 = arith.mulf %84, %93 : vector<16x128xf32>
    %95 = vector.broadcast %6 : vector<1x128xf32> to vector<16x128xf32>
    %96 = arith.mulf %94, %95 : vector<16x128xf32>
    %97 = vector.broadcast %7 : vector<1x128xf32> to vector<16x128xf32>
    %98 = arith.addf %96, %97 : vector<16x128xf32>
    %c0_42 = arith.constant 0 : index
    %c0_43 = arith.constant 0 : index
    %99 = vector.load %arg9[%c0_42, %c0_43] : memref<128x128xbf16, #tpu.memory_space<vmem>>, vector<128x128xbf16>
    %100 = arith.truncf %98 : vector<16x128xf32> to vector<16x128xbf16>
    %cst_44 = arith.constant dense<0.000000e+00> : vector<16x128xf32>
    %101 = tpu.matmul %100, %99, %cst_44 {dimension_numbers = #tpu.dot_dimension_numbers<[1], [0], [0], [1], [0, 0, 1, 1], [], []>} : vector<16x128xbf16>, vector<128x128xbf16>, vector<16x128xf32> -> vector<16x128xf32>
    %102 = arith.mulf %101, %101 : vector<16x128xf32>
    %cst_45 = arith.constant dense<0.000000e+00> : vector<16xf32>
    %103 = vector.multi_reduction <add>, %102, %cst_45 [1] : vector<16x128xf32> to vector<16xf32>
    %104 = vector.shape_cast %103 : vector<16xf32> to vector<16x1xf32>
    %cst_46 = arith.constant 9.99999996E-13 : f32
    %105 = vector.broadcast %cst_46 : f32 to vector<16x1xf32>
    %106 = arith.addf %104, %105 : vector<16x1xf32>
    %107 = math.rsqrt %106 : vector<16x1xf32>
    %108 = vector.broadcast %107 : vector<16x1xf32> to vector<16x128xf32>
    %109 = arith.mulf %101, %108 : vector<16x128xf32>
    %c0_47 = arith.constant 0 : index
    %c0_48 = arith.constant 0 : index
    %110 = vector.load %arg10[%c0_47, %c0_48] : memref<128x128xbf16, #tpu.memory_space<vmem>>, vector<128x128xbf16>
    %111 = arith.truncf %109 : vector<16x128xf32> to vector<16x128xbf16>
    %cst_49 = arith.constant dense<0.000000e+00> : vector<16x128xf32>
    %112 = tpu.matmul %111, %110, %cst_49 {dimension_numbers = #tpu.dot_dimension_numbers<[1], [0], [0], [1], [0, 0, 1, 1], [], []>} : vector<16x128xbf16>, vector<128x128xbf16>, vector<16x128xf32> -> vector<16x128xf32>
    %113 = arith.truncf %112 : vector<16x128xf32> to vector<16x128xbf16>
    %c0_50 = arith.constant 0 : index
    %c0_51 = arith.constant 0 : index
    %114 = vector.load %arg12[%c0_50, %c0_51] : memref<16x128xbf16, #tpu.memory_space<vmem>>, vector<16x128xbf16>
    tpu.vector_store %arg12[%c0_50, %c0_51], %113 {strides = array<i32>} : memref<16x128xbf16, #tpu.memory_space<vmem>>, vector<16x128xbf16>,
    return
  }
  func.func @transform_0(%arg0: i32, %arg1: i32) -> (i32, i32) {
    %c1_i32 = arith.constant 1 : i32
    %0 = arith.muli %arg0, %c1_i32 : i32
    %1 = arith.addi %0, %arg1 : i32
    %c0_i32 = arith.constant 0 : i32
    %c0_i32_0 = arith.constant 0 : i32
    return %1, %c0_i32 : i32, i32
  }
  func.func @transform_1(%arg0: i32, %arg1: i32) -> (i32, i32) {
    %c0_i32 = arith.constant 0 : i32
    %c0_i32_0 = arith.constant 0 : i32
    return %arg1, %c0_i32 : i32, i32
  }
  func.func @transform_2(%arg0: i32, %arg1: i32) -> (i32, i32) {
    %c0_i32 = arith.constant 0 : i32
    %c0_i32_0 = arith.constant 0 : i32
    %c0_i32_1 = arith.constant 0 : i32
    return %c0_i32, %c0_i32_0 : i32, i32
  }
  func.func @transform_3(%arg0: i32, %arg1: i32) -> (i32, i32) {
    %c0_i32 = arith.constant 0 : i32
    %c0_i32_0 = arith.constant 0 : i32
    %c0_i32_1 = arith.constant 0 : i32
    return %c0_i32, %c0_i32_0 : i32, i32
  }
  func.func @transform_4(%arg0: i32, %arg1: i32) -> (i32, i32) {
    %c0_i32 = arith.constant 0 : i32
    %c0_i32_0 = arith.constant 0 : i32
    %c0_i32_1 = arith.constant 0 : i32
    return %c0_i32, %c0_i32_0 : i32, i32
  }
  func.func @transform_5(%arg0: i32, %arg1: i32) -> (i32, i32) {
    %c0_i32 = arith.constant 0 : i32
    %c0_i32_0 = arith.constant 0 : i32
    %c0_i32_1 = arith.constant 0 : i32
    return %c0_i32, %c0_i32_0 : i32, i32
  }
  func.func @transform_6(%arg0: i32, %arg1: i32) -> (i32, i32) {
    %c0_i32 = arith.constant 0 : i32
    %c0_i32_0 = arith.constant 0 : i32
    %c0_i32_1 = arith.constant 0 : i32
    return %c0_i32, %c0_i32_0 : i32, i32
  }
  func.func @transform_7(%arg0: i32, %arg1: i32) -> (i32, i32) {
    %c0_i32 = arith.constant 0 : i32
    %c0_i32_0 = arith.constant 0 : i32
    %c0_i32_1 = arith.constant 0 : i32
    return %c0_i32, %c0_i32_0 : i32, i32
  }
  func.func @transform_8(%arg0: i32, %arg1: i32) -> (i32, i32) {
    %c0_i32 = arith.constant 0 : i32
    %c0_i32_0 = arith.constant 0 : i32
    %c0_i32_1 = arith.constant 0 : i32
    return %c0_i32, %c0_i32_0 : i32, i32
  }
  func.func @transform_9(%arg0: i32, %arg1: i32) -> (i32, i32) {
    %c0_i32 = arith.constant 0 : i32
    %c0_i32_0 = arith.constant 0 : i32
    %c0_i32_1 = arith.constant 0 : i32
    return %c0_i32, %c0_i32_0 : i32, i32
  }
  func.func @transform_10(%arg0: i32, %arg1: i32) -> (i32, i32) {
    %c1_i32 = arith.constant 1 : i32
    %0 = arith.muli %arg0, %c1_i32 : i32
    %1 = arith.addi %0, %arg1 : i32
    %c0_i32 = arith.constant 0 : i32
    %c0_i32_0 = arith.constant 0 : i32
    return %1, %c0_i32 : i32, i32
  }
}

</mosaic_0001>

<llo_original>
// kernel: tpu_custom_call.1
$region0: #{tpu_custom_call.1}
  #allocation0 [shape = 'u32[]', space=smem, size = 0x4, offset = 0x4, fixed_abs, tag = 'smem constant byte address 0x4 - core index']
  #allocation1 [shape = 'u32[72,128]{1,0:T(1,128)}', space=vmem, size = 0x9000, scoped, tag = 'internal scratch']
  %s0 = inlined_call_operand.hbm [shape: f32[16,128], index: 0, kind: input, shape index: {}]
  %s1 = inlined_call_operand.hbm [shape: f32[8,128], index: 1, kind: input, shape index: {}]
  %s2 = inlined_call_operand.hbm [shape: f32[16,128], index: 2, kind: output, shape index: {}]
  %s3 = sld [smem:[#allocation0]]
  $region49: #{tpu_custom_call.1} parent=0
    _
  %s5 = ssub.s32 1, %s3
  %s6 = scalar_select 0, %s5, %s3
  $region1: #{tpu_custom_call.1} parent=0
    #allocation2 [shape = 'u8[8192]{0}', space=vmem, size = 0x2000, scoped, tag = 'input window, operand 0']
    #allocation3 [shape = 's32[2]{0}', space=sflag, size = 0x8, scoped, tag = 'scoped memory for tpu_custom_call.1']
    #allocation4 [shape = 's32[2]{0}', space=sflag, size = 0x8, scoped, tag = 'scoped memory for tpu_custom_call.1']
    #allocation5 [shape = 'u8[4096]{0}', space=vmem, size = 0x1000, scoped, tag = 'input window, operand 1, single buffered']
    #allocation6 [shape = 's32[1]{0}', space=sflag, size = 0x4, scoped, tag = 'scoped memory for tpu_custom_call.1']
    #allocation7 [shape = 'u8[8192]{0}', space=vmem, size = 0x2000, scoped, tag = 'output window, operand 0']
    %7 = vsyncpa [#allocation3], 0
    %s8 = scalar_lea.sflag [#allocation3], 1
    %9 = vsyncpa %s8, 0
    %10 = vsyncpa [#allocation6], 0
    %11 = vsyncpa [#allocation4], 0
    %s12 = scalar_lea.sflag [#allocation4], 1
    %13 = vsyncpa %s12, 0
    loop: start=0, step=1, limit=4
    $region2: #{tpu_custom_call.1} parent=1 // loop_pre_header
      _
    $region3: #{tpu_custom_call.1} parent=1 // loop_header
      %s15 = sphi 0, %s19
      %p16 = scmp.ge.s32.totalorder %s15, 4
      %s25 = sphi 0, %s27
      %s28 = sphi 0, %s25
      %s29 = sphi 0, %s28
      %s45 = sphi 0, %s29
      %s49 = sphi 0, %s49
      %s51 = sphi 0, %s49
      %s52 = sphi 0, %s51
      %s66 = sphi 0, %s52
      %s72 = sphi 0, %s74
      %s75 = sphi 0, %s72
      %s76 = sphi 0, %s75
      %s92 = sphi 0, %s76
    $region4: #{tpu_custom_call.1} parent=1 // loop_header_branch
      %18 = sbr.rel (%p16) target = $region8
    $region5: #{tpu_custom_call.1} parent=1 // loop_body
      %s20 = ssub.s32 %s15, 1
      %s21 = ssub.s32 %s15, 2
      %s22 = sadd.s32 %s15, 1
      %s23 = ssub.s32 %s15, %s22
      %p24 = scmp.eq.s32.totalorder %s23, 0
      %s26 = sadd.s32 %s25, 1
      %s27 = scalar_select %p24, %s25, %s26
      %p30 = pneg %p24
      %p31 = scmp.eq.s32.totalorder %s15, 1
      %p32 = por %p30, %p31
      %p33 = scmp.ne.s32.totalorder %s25, %s28
      %p34 = scmp.eq.s32.totalorder %s15, 0
      %p35 = por %p33, %p34
      %p36 = scmp.ne.s32.totalorder %s25, %s28
      %p37 = scmp.eq.s32.totalorder %s20, 1
      %p38 = por %p36, %p37
      %p39 = scmp.ne.s32.totalorder %s28, %s29
      %p40 = scmp.eq.s32.totalorder %s20, 0
      %p41 = por %p39, %p40
      %p42 = scmp.ne.s32.totalorder %s28, %s29
      %p43 = scmp.eq.s32.totalorder %s21, 1
      %p44 = por %p42, %p43
      %p46 = scmp.ne.s32.totalorder %s29, %s45
      %p47 = scmp.eq.s32.totalorder %s21, 0
      %p48 = por %p46, %p47
      %s50 = sadd.s32 %s49, 1
      %p53 = scmp.eq.s32.totalorder %s15, 1
      %p54 = scmp.ne.s32.totalorder %s49, %s51
      %p55 = scmp.eq.s32.totalorder %s15, 0
      %p56 = por %p54, %p55
      %p57 = scmp.ne.s32.totalorder %s49, %s51
      %p58 = scmp.eq.s32.totalorder %s20, 1
      %p59 = por %p57, %p58
      %p60 = scmp.ne.s32.totalorder %s51, %s52
      %p61 = scmp.eq.s32.totalorder %s20, 0
      %p62 = por %p60, %p61
      %p63 = scmp.ne.s32.totalorder %s51, %s52
      %p64 = scmp.eq.s32.totalorder %s21, 1
      %p65 = por %p63, %p64
      %p67 = scmp.ne.s32.totalorder %s52, %s66
      %p68 = scmp.eq.s32.totalorder %s21, 0
      %p69 = por %p67, %p68
      %s70 = ssub.s32 %s15, %s22
      %p71 = scmp.eq.s32.totalorder %s70, 0
      %s73 = sadd.s32 %s72, 1
      %s74 = scalar_select %p71, %s72, %s73
      %p77 = pneg %p71
      %p78 = scmp.eq.s32.totalorder %s15, 1
      %p79 = por %p77, %p78
      %p80 = scmp.ne.s32.totalorder %s72, %s75
      %p81 = scmp.eq.s32.totalorder %s15, 0
      %p82 = por %p80, %p81
      %p83 = scmp.ne.s32.totalorder %s72, %s75
      %p84 = scmp.eq.s32.totalorder %s20, 1
      %p85 = por %p83, %p84
      %p86 = scmp.ne.s32.totalorder %s75, %s76
      %p87 = scmp.eq.s32.totalorder %s20, 0
      %p88 = por %p86, %p87
      %p89 = scmp.ne.s32.totalorder %s75, %s76
      %p90 = scmp.eq.s32.totalorder %s21, 1
      %p91 = por %p89, %p90
      %p93 = scmp.ne.s32.totalorder %s76, %s92
      %p94 = scmp.eq.s32.totalorder %s21, 0
      %p95 = por %p93, %p94
      %p96 = scmp.le.s32.totalorder 1, %s15
      %p97 = scmp.lt.s32.totalorder %s15, 3
      %p98 = pnand %p96, %p97
      %p99 = pneg %p98
      // Predicated region
      $region9: #{tpu_custom_call.1} parent=5 // pred_check
        _
      $region10: #{tpu_custom_call.1} parent=5 // pred_check_branch
        %101 = sbr.rel (%p98) target = $region12
      $region11: #{tpu_custom_call.1} parent=5 // pred_region
        %s102 = ssub.s32 %s15, 1
        // Predicated region
        $region13: #{tpu_custom_call.1} parent=11 // pred_check
          %p103 = pneg %p62
        $region14: #{tpu_custom_call.1} parent=11 // pred_check_branch
          %105 = sbr.rel (%p103) target = $region16
        $region15: #{tpu_custom_call.1} parent=11 // pred_region
          %107 = vsyncadd [#allocation6], 0
          %s109 = sshll.u32 %s1, 4
          %s110 = int_to_ptr.hbm [resolvable:$true] %s109
          %s111 = sshll.u32 [#allocation5], 4
          %s112 = int_to_ptr.vmem [resolvable:$true] %s111
          %114 = dma.hbm_to_vmem [thread:$0]  %s110, 128, %s112, [#allocation6]
        $region16: #{tpu_custom_call.1} parent=11 // pred_fallthru
          _
      $region12: #{tpu_custom_call.1} parent=5 // pred_fallthru
        _
      %p115 = scmp.lt.s32.totalorder %s15, 2
      // Predicated region
      $region17: #{tpu_custom_call.1} parent=5 // pred_check
        %p116 = pneg %p115
      $region18: #{tpu_custom_call.1} parent=5 // pred_check_branch
        %118 = sbr.rel (%p116) target = $region20
      $region19: #{tpu_custom_call.1} parent=5 // pred_region
        // Predicated region
        $region21: #{tpu_custom_call.1} parent=19 // pred_check
          %p119 = pneg %p35
        $region22: #{tpu_custom_call.1} parent=19 // pred_check_branch
          %121 = sbr.rel (%p119) target = $region24
        $region23: #{tpu_custom_call.1} parent=19 // pred_region
          %s122 = sand.u32 %s25, 1
          %s123 = scalar_lea.sflag [#allocation3], %s122
          %s124 = sand.u32 %s25, 1
          %s125 = smul.addr %s124, 8
          %s126 = scalar_lea.vmem [#allocation2], %s125
          %128 = vsyncadd %s123, 0
          %s129 = smul.addr %s15, 8
          %s130 = scalar_lea.hbm %s0, %s129
          %s132 = sshll.u32 %s130, 4
          %s133 = int_to_ptr.hbm [resolvable:$true] %s132
          %s134 = sshll.u32 %s126, 4
          %s135 = int_to_ptr.vmem [resolvable:$true] %s134
          %137 = dma.hbm_to_vmem [thread:$0]  %s133, 128, %s135, %s123
        $region24: #{tpu_custom_call.1} parent=19 // pred_fallthru
          _
      $region20: #{tpu_custom_call.1} parent=5 // pred_fallthru
        _
      %p138 = scmp.le.s32.totalorder 1, %s15
      %p139 = scmp.lt.s32.totalorder %s15, 3
      %p140 = pnand %p138, %p139
      %p141 = pneg %p140
      // Predicated region
      $region25: #{tpu_custom_call.1} parent=5 // pred_check
        _
      $region26: #{tpu_custom_call.1} parent=5 // pred_check_branch
        %143 = sbr.rel (%p140) target = $region28
      $region27: #{tpu_custom_call.1} parent=5 // pred_region
        %s144 = ssub.s32 %s15, 1
        %s145 = sand.u32 %s28, 1
        %s146 = scalar_lea.sflag [#allocation3], %s145
        %s147 = sand.u32 %s28, 1
        %s148 = smul.addr %s147, 8
        %s149 = scalar_lea.vmem [#allocation2], %s148
        // Predicated region
        $region29: #{tpu_custom_call.1} parent=27 // pred_check
          %p150 = pneg %p41
        $region30: #{tpu_custom_call.1} parent=27 // pred_check_branch
          %152 = sbr.rel (%p150) target = $region32
        $region31: #{tpu_custom_call.1} parent=27 // pred_region
          %154 = dma.done %s146, 128
        $region32: #{tpu_custom_call.1} parent=27 // pred_fallthru
          _
        // Predicated region
        $region33: #{tpu_custom_call.1} parent=27 // pred_check
          %p155 = pneg %p62
        $region34: #{tpu_custom_call.1} parent=27 // pred_check_branch
          %157 = sbr.rel (%p155) target = $region36
        $region35: #{tpu_custom_call.1} parent=27 // pred_region
          %159 = dma.done [#allocation6], 128
        $region36: #{tpu_custom_call.1} parent=27 // pred_fallthru
          _
        %s160 = sand.u32 %s28, 1
        %s161 = scalar_lea.sflag [#allocation3], %s160
        %s162 = sand.u32 %s28, 1
        %s163 = smul.addr %s162, 8
        %s164 = scalar_lea.vmem [#allocation2], %s163
        %p165 = pneg %p41
        %p166 = pneg %p38
        %p167 = pneg %p62
        %p168 = pneg %p59
        %p169 = pneg %p88
        %p170 = pneg %p85
        %s171 = sand.u32 %s75, 1
        %s172 = scalar_lea.sflag [#allocation4], %s171
        %s173 = sand.u32 %s75, 1
        %s174 = smul.addr %s173, 8
        %s175 = scalar_lea.vmem [#allocation7], %s174
        %v176 = vld [vmem:[%s149] sm:$0xff]
        %v177 = vld [vmem:[#allocation5] sm:$0xff]
        %v178 = vadd.f32 %v176, %v177
        %179 = vst [vmem:[%s175] sm:$0xff] %v178
        %s180 = sand.u32 %s75, 1
        %s181 = scalar_lea.sflag [#allocation4], %s180
        %s182 = sand.u32 %s75, 1
        %s183 = smul.addr %s182, 8
        %s184 = scalar_lea.vmem [#allocation7], %s183
        // Predicated region
        $region37: #{tpu_custom_call.1} parent=27 // pred_check
          %p185 = pneg %p85
        $region38: #{tpu_custom_call.1} parent=27 // pred_check_branch
          %187 = sbr.rel (%p185) target = $region40
        $region39: #{tpu_custom_call.1} parent=27 // pred_region
          %189 = vsyncadd %s181, 0
          %s190 = smul.addr %s20, 8
          %s191 = scalar_lea.hbm %s2, %s190
          %s193 = sshll.u32 %s184, 4
          %s194 = int_to_ptr.vmem [resolvable:$true] %s193
          %s195 = sshll.u32 %s191, 4
          %s196 = int_to_ptr.hbm [resolvable:$true] %s195
          %198 = dma.vmem_to_hbm [thread:$0]  %s194, 128, %s196, %s181
        $region40: #{tpu_custom_call.1} parent=27 // pred_fallthru
          _
      $region28: #{tpu_custom_call.1} parent=5 // pred_fallthru
        _
      %p199 = scmp.le.s32.totalorder 2, %s15
      // Predicated region
      $region41: #{tpu_custom_call.1} parent=5 // pred_check
        %p200 = pneg %p199
      $region42: #{tpu_custom_call.1} parent=5 // pred_check_branch
        %202 = sbr.rel (%p200) target = $region44
      $region43: #{tpu_custom_call.1} parent=5 // pred_region
        %s203 = ssub.s32 %s15, 2
        // Predicated region
        $region45: #{tpu_custom_call.1} parent=43 // pred_check
          %p204 = pneg %p91
        $region46: #{tpu_custom_call.1} parent=43 // pred_check_branch
          %206 = sbr.rel (%p204) target = $region48
        $region47: #{tpu_custom_call.1} parent=43 // pred_region
          %s207 = sand.u32 %s76, 1
          %s208 = scalar_lea.sflag [#allocation4], %s207
          %s209 = sand.u32 %s76, 1
          %s210 = smul.addr %s209, 8
          %s211 = scalar_lea.vmem [#allocation7], %s210
          %213 = dma.done %s208, 128
        $region48: #{tpu_custom_call.1} parent=43 // pred_fallthru
          _
      $region44: #{tpu_custom_call.1} parent=5 // pred_fallthru
        _
    $region6: #{tpu_custom_call.1} parent=1 // loop_footer
      %s19 = sadd.s32 1, %s15
    $region7: #{tpu_custom_call.1} parent=1 // loop_footer_branch
      %14 = sbr.rel target = $region3
    $region8: #{tpu_custom_call.1} parent=1 // loop_exit
      _
    %214 = vsyncpa [#allocation3], 1
    %s215 = scalar_lea.sflag [#allocation3], 1
    %216 = vsyncpa %s215, 1
    %217 = vsyncpa [#allocation6], 1
    %218 = vsyncpa [#allocation4], 1
    %s219 = scalar_lea.sflag [#allocation4], 1
    %220 = vsyncpa %s219, 1

// kernel: maskclip_forward.1
$region0: #{maskclip_forward.1}
  #allocation0 [shape = 'u32[]', space=smem, size = 0x4, offset = 0x4, fixed_abs, tag = 'smem constant byte address 0x4 - core index']
  #allocation1 [shape = 'u32[72,128]{1,0:T(1,128)}', space=vmem, size = 0x9000, scoped, tag = 'internal scratch']
  %s0 = inlined_call_operand.vmem [shape: bf16[32,256], index: 0, kind: input, shape index: {}]
  %s1 = inlined_call_operand.vmem [shape: f32[16,128], index: 1, kind: input, shape index: {}]
  %s2 = inlined_call_operand.vmem [shape: bf16[256,128], index: 2, kind: input, shape index: {}]
  %s3 = inlined_call_operand.vmem [shape: bf16[128,128], index: 3, kind: input, shape index: {}]
  %s4 = inlined_call_operand.vmem [shape: bf16[128,512], index: 4, kind: input, shape index: {}]
  %s5 = inlined_call_operand.vmem [shape: f32[1,512], index: 5, kind: input, shape index: {}]
  %s6 = inlined_call_operand.vmem [shape: bf16[512,128], index: 6, kind: input, shape index: {}]
  %s7 = inlined_call_operand.vmem [shape: bf16[128,128], index: 7, kind: input, shape index: {}]
  %s8 = inlined_call_operand.vmem [shape: bf16[128,128], index: 8, kind: input, shape index: {}]
  %s9 = inlined_call_operand.vmem [shape: f32[8,128], index: 9, kind: input, shape index: {}]
  %s10 = inlined_call_operand.vmem [shape: bf16[32,128], index: 10, kind: output, shape index: {}]
  %s11 = sld [smem:[#allocation0]]
  $region73: #{maskclip_forward.1} parent=0
    _
  %s13 = ssub.s32 1, %s11
  %s14 = scalar_select 0, %s13, %s11
  loop: start=0, step=1, limit=4
  $region2: #{maskclip_forward.1} parent=0 // loop_pre_header
    _
  $region3: #{maskclip_forward.1} parent=0 // loop_header
    %s16 = sphi 0, %s20
    %p17 = scmp.ge.s32.totalorder %s16, 4
    %s23 = sphi 0, %s35
    %s24 = sphi 0, %s31
    %s25 = sphi 0, %s23
    %s26 = sphi 0, %s24
    %s27 = sphi 0, %s25
    %s28 = sphi 0, %s26
    %s40 = sphi 0, %s42
    %s43 = sphi 0, %s40
    %s44 = sphi 0, %s43
    %s60 = sphi 0, %s44
    %s66 = sphi 0, %s68
    %s69 = sphi 0, %s66
    %s70 = sphi 0, %s69
    %s86 = sphi 0, %s70
    %s90 = sphi 0, %s90
    %s92 = sphi 0, %s90
    %s93 = sphi 0, %s92
    %s107 = sphi 0, %s93
    %s111 = sphi 0, %s111
    %s113 = sphi 0, %s111
    %s114 = sphi 0, %s113
    %s128 = sphi 0, %s114
    %s132 = sphi 0, %s132
    %s134 = sphi 0, %s132
    %s135 = sphi 0, %s134
    %s149 = sphi 0, %s135
    %s153 = sphi 0, %s153
    %s155 = sphi 0, %s153
    %s156 = sphi 0, %s155
    %s170 = sphi 0, %s156
    %s174 = sphi 0, %s174
    %s176 = sphi 0, %s174
    %s177 = sphi 0, %s176
    %s191 = sphi 0, %s177
    %s195 = sphi 0, %s195
    %s197 = sphi 0, %s195
    %s198 = sphi 0, %s197
    %s212 = sphi 0, %s198
    %s216 = sphi 0, %s216
    %s218 = sphi 0, %s216
    %s219 = sphi 0, %s218
    %s233 = sphi 0, %s219
    %s237 = sphi 0, %s237
    %s239 = sphi 0, %s237
    %s240 = sphi 0, %s239
    %s254 = sphi 0, %s240
    %s262 = sphi 0, %s264
    %s265 = sphi 0, %s262
    %s266 = sphi 0, %s265
    %s282 = sphi 0, %s266
  $region4: #{maskclip_forward.1} parent=0 // loop_header_branch
    %19 = sbr.rel (%p17) target = $region8
  $region5: #{maskclip_forward.1} parent=0 // loop_body
    %s21 = ssub.s32 %s16, 1
    %s22 = ssub.s32 %s16, 2
    %s29 = sadd.s32 1, %s24
    %p30 = scmp.ge.s32.totalorder %s29, 1
    %s31 = scalar_select %p30, 0, %s29
    %s32 = sadd.s32 1, %s23
    %s33 = scalar_select %p30, %s32, %s23
    %p34 = scmp.ge.s32.totalorder %s33, 2
    %s35 = scalar_select %p34, 0, %s33
    %s36 = sadd.s32 %s23, %s24
    %s37 = sadd.s32 %s35, %s31
    %s38 = ssub.s32 %s36, %s37
    %p39 = scmp.eq.s32.totalorder %s38, 0
    %s41 = sadd.s32 %s40, 1
    %s42 = scalar_select %p39, %s40, %s41
    %p45 = pneg %p39
    %p46 = scmp.eq.s32.totalorder %s16, 1
    %p47 = por %p45, %p46
    %p48 = scmp.ne.s32.totalorder %s40, %s43
    %p49 = scmp.eq.s32.totalorder %s16, 0
    %p50 = por %p48, %p49
    %p51 = scmp.ne.s32.totalorder %s40, %s43
    %p52 = scmp.eq.s32.totalorder %s21, 1
    %p53 = por %p51, %p52
    %p54 = scmp.ne.s32.totalorder %s43, %s44
    %p55 = scmp.eq.s32.totalorder %s21, 0
    %p56 = por %p54, %p55
    %p57 = scmp.ne.s32.totalorder %s43, %s44
    %p58 = scmp.eq.s32.totalorder %s22, 1
    %p59 = por %p57, %p58
    %p61 = scmp.ne.s32.totalorder %s44, %s60
    %p62 = scmp.eq.s32.totalorder %s22, 0
    %p63 = por %p61, %p62
    %s64 = ssub.s32 %s24, %s31
    %p65 = scmp.eq.s32.totalorder %s64, 0
    %s67 = sadd.s32 %s66, 1
    %s68 = scalar_select %p65, %s66, %s67
    %p71 = pneg %p65
    %p72 = scmp.eq.s32.totalorder %s16, 1
    %p73 = por %p71, %p72
    %p74 = scmp.ne.s32.totalorder %s66, %s69
    %p75 = scmp.eq.s32.totalorder %s16, 0
    %p76 = por %p74, %p75
    %p77 = scmp.ne.s32.totalorder %s66, %s69
    %p78 = scmp.eq.s32.totalorder %s21, 1
    %p79 = por %p77, %p78
    %p80 = scmp.ne.s32.totalorder %s69, %s70
    %p81 = scmp.eq.s32.totalorder %s21, 0
    %p82 = por %p80, %p81
    %p83 = scmp.ne.s32.totalorder %s69, %s70
    %p84 = scmp.eq.s32.totalorder %s22, 1
    %p85 = por %p83, %p84
    %p87 = scmp.ne.s32.totalorder %s70, %s86
    %p88 = scmp.eq.s32.totalorder %s22, 0
    %p89 = por %p87, %p88
    %s91 = sadd.s32 %s90, 1
    %p94 = scmp.eq.s32.totalorder %s16, 1
    %p95 = scmp.ne.s32.totalorder %s90, %s92
    %p96 = scmp.eq.s32.totalorder %s16, 0
    %p97 = por %p95, %p96
    %p98 = scmp.ne.s32.totalorder %s90, %s92
    %p99 = scmp.eq.s32.totalorder %s21, 1
    %p100 = por %p98, %p99
    %p101 = scmp.ne.s32.totalorder %s92, %s93
    %p102 = scmp.eq.s32.totalorder %s21, 0
    %p103 = por %p101, %p102
    %p104 = scmp.ne.s32.totalorder %s92, %s93
    %p105 = scmp.eq.s32.totalorder %s22, 1
    %p106 = por %p104, %p105
    %p108 = scmp.ne.s32.totalorder %s93, %s107
    %p109 = scmp.eq.s32.totalorder %s22, 0
    %p110 = por %p108, %p109
    %s112 = sadd.s32 %s111, 1
    %p115 = scmp.eq.s32.totalorder %s16, 1
    %p116 = scmp.ne.s32.totalorder %s111, %s113
    %p117 = scmp.eq.s32.totalorder %s16, 0
    %p118 = por %p116, %p117
    %p119 = scmp.ne.s32.totalorder %s111, %s113
    %p120 = scmp.eq.s32.totalorder %s21, 1
    %p121 = por %p119, %p120
    %p122 = scmp.ne.s32.totalorder %s113, %s114
    %p123 = scmp.eq.s32.totalorder %s21, 0
    %p124 = por %p122, %p123
    %p125 = scmp.ne.s32.totalorder %s113, %s114
    %p126 = scmp.eq.s32.totalorder %s22, 1
    %p127 = por %p125, %p126
    %p129 = scmp.ne.s32.totalorder %s114, %s128
    %p130 = scmp.eq.s32.totalorder %s22, 0
    %p131 = por %p129, %p130
    %s133 = sadd.s32 %s132, 1
    %p136 = scmp.eq.s32.totalorder %s16, 1
    %p137 = scmp.ne.s32.totalorder %s132, %s134
    %p138 = scmp.eq.s32.totalorder %s16, 0
    %p139 = por %p137, %p138
    %p140 = scmp.ne.s32.totalorder %s132, %s134
    %p141 = scmp.eq.s32.totalorder %s21, 1
    %p142 = por %p140, %p141
    %p143 = scmp.ne.s32.totalorder %s134, %s135
    %p144 = scmp.eq.s32.totalorder %s21, 0
    %p145 = por %p143, %p144
    %p146 = scmp.ne.s32.totalorder %s134, %s135
    %p147 = scmp.eq.s32.totalorder %s22, 1
    %p148 = por %p146, %p147
    %p150 = scmp.ne.s32.totalorder %s135, %s149
    %p151 = scmp.eq.s32.totalorder %s22, 0
    %p152 = por %p150, %p151
    %s154 = sadd.s32 %s153, 1
    %p157 = scmp.eq.s32.totalorder %s16, 1
    %p158 = scmp.ne.s32.totalorder %s153, %s155
    %p159 = scmp.eq.s32.totalorder %s16, 0
    %p160 = por %p158, %p159
    %p161 = scmp.ne.s32.totalorder %s153, %s155
    %p162 = scmp.eq.s32.totalorder %s21, 1
    %p163 = por %p161, %p162
    %p164 = scmp.ne.s32.totalorder %s155, %s156
    %p165 = scmp.eq.s32.totalorder %s21, 0
    %p166 = por %p164, %p165
    %p167 = scmp.ne.s32.totalorder %s155, %s156
    %p168 = scmp.eq.s32.totalorder %s22, 1
    %p169 = por %p167, %p168
    %p171 = scmp.ne.s32.totalorder %s156, %s170
    %p172 = scmp.eq.s32.totalorder %s22, 0
    %p173 = por %p171, %p172
    %s175 = sadd.s32 %s174, 1
    %p178 = scmp.eq.s32.totalorder %s16, 1
    %p179 = scmp.ne.s32.totalorder %s174, %s176
    %p180 = scmp.eq.s32.totalorder %s16, 0
    %p181 = por %p179, %p180
    %p182 = scmp.ne.s32.totalorder %s174, %s176
    %p183 = scmp.eq.s32.totalorder %s21, 1
    %p184 = por %p182, %p183
    %p185 = scmp.ne.s32.totalorder %s176, %s177
    %p186 = scmp.eq.s32.totalorder %s21, 0
    %p187 = por %p185, %p186
    %p188 = scmp.ne.s32.totalorder %s176, %s177
    %p189 = scmp.eq.s32.totalorder %s22, 1
    %p190 = por %p188, %p189
    %p192 = scmp.ne.s32.totalorder %s177, %s191
    %p193 = scmp.eq.s32.totalorder %s22, 0
    %p194 = por %p192, %p193
    %s196 = sadd.s32 %s195, 1
    %p199 = scmp.eq.s32.totalorder %s16, 1
    %p200 = scmp.ne.s32.totalorder %s195, %s197
    %p201 = scmp.eq.s32.totalorder %s16, 0
    %p202 = por %p200, %p201
    %p203 = scmp.ne.s32.totalorder %s195, %s197
    %p204 = scmp.eq.s32.totalorder %s21, 1
    %p205 = por %p203, %p204
    %p206 = scmp.ne.s32.totalorder %s197, %s198
    %p207 = scmp.eq.s32.totalorder %s21, 0
    %p208 = por %p206, %p207
    %p209 = scmp.ne.s32.totalorder %s197, %s198
    %p210 = scmp.eq.s32.totalorder %s22, 1
    %p211 = por %p209, %p210
    %p213 = scmp.ne.s32.totalorder %s198, %s212
    %p214 = scmp.eq.s32.totalorder %s22, 0
    %p215 = por %p213, %p214
    %s217 = sadd.s32 %s216, 1
    %p220 = scmp.eq.s32.totalorder %s16, 1
    %p221 = scmp.ne.s32.totalorder %s216, %s218
    %p222 = scmp.eq.s32.totalorder %s16, 0
    %p223 = por %p221, %p222
    %p224 = scmp.ne.s32.totalorder %s216, %s218
    %p225 = scmp.eq.s32.totalorder %s21, 1
    %p226 = por %p224, %p225
    %p227 = scmp.ne.s32.totalorder %s218, %s219
    %p228 = scmp.eq.s32.totalorder %s21, 0
    %p229 = por %p227, %p228
    %p230 = scmp.ne.s32.totalorder %s218, %s219
    %p231 = scmp.eq.s32.totalorder %s22, 1
    %p232 = por %p230, %p231
    %p234 = scmp.ne.s32.totalorder %s219, %s233
    %p235 = scmp.eq.s32.totalorder %s22, 0
    %p236 = por %p234, %p235
    %s238 = sadd.s32 %s237, 1
    %p241 = scmp.eq.s32.totalorder %s16, 1
    %p242 = scmp.ne.s32.totalorder %s237, %s239
    %p243 = scmp.eq.s32.totalorder %s16, 0
    %p244 = por %p242, %p243
    %p245 = scmp.ne.s32.totalorder %s237, %s239
    %p246 = scmp.eq.s32.totalorder %s21, 1
    %p247 = por %p245, %p246
    %p248 = scmp.ne.s32.totalorder %s239, %s240
    %p249 = scmp.eq.s32.totalorder %s21, 0
    %p250 = por %p248, %p249
    %p251 = scmp.ne.s32.totalorder %s239, %s240
    %p252 = scmp.eq.s32.totalorder %s22, 1
    %p253 = por %p251, %p252
    %p255 = scmp.ne.s32.totalorder %s240, %s254
    %p256 = scmp.eq.s32.totalorder %s22, 0
    %p257 = por %p255, %p256
    %s258 = sadd.s32 %s23, %s24
    %s259 = sadd.s32 %s35, %s31
    %s260 = ssub.s32 %s258, %s259
    %p261 = scmp.eq.s32.totalorder %s260, 0
    %s263 = sadd.s32 %s262, 1
    %s264 = scalar_select %p261, %s262, %s263
    %p267 = pneg %p261
    %p268 = scmp.eq.s32.totalorder %s16, 1
    %p269 = por %p267, %p268
    %p270 = scmp.ne.s32.totalorder %s262, %s265
    %p271 = scmp.eq.s32.totalorder %s16, 0
    %p272 = por %p270, %p271
    %p273 = scmp.ne.s32.totalorder %s262, %s265
    %p274 = scmp.eq.s32.totalorder %s21, 1
    %p275 = por %p273, %p274
    %p276 = scmp.ne.s32.totalorder %s265, %s266
    %p277 = scmp.eq.s32.totalorder %s21, 0
    %p278 = por %p276, %p277
    %p279 = scmp.ne.s32.totalorder %s265, %s266
    %p280 = scmp.eq.s32.totalorder %s22, 1
    %p281 = por %p279, %p280
    %p283 = scmp.ne.s32.totalorder %s266, %s282
    %p284 = scmp.eq.s32.totalorder %s22, 0
    %p285 = por %p283, %p284
    %p286 = scmp.le.s32.totalorder 1, %s16
    %p287 = scmp.lt.s32.totalorder %s16, 3
    %p288 = pnand %p286, %p287
    %p289 = pneg %p288
    // Predicated region
    $region9: #{maskclip_forward.1} parent=5 // pred_check
      _
    $region10: #{maskclip_forward.1} parent=5 // pred_check_branch
      %291 = sbr.rel (%p288) target = $region12
    $region11: #{maskclip_forward.1} parent=5 // pred_region
      %s292 = ssub.s32 %s16, 1
      // Predicated region
      $region13: #{maskclip_forward.1} parent=11 // pred_check
        %p293 = pneg %p82
      $region14: #{maskclip_forward.1} parent=11 // pred_check_branch
        %295 = sbr.rel (%p293) target = $region16
      $region15: #{maskclip_forward.1} parent=11 // pred_region
        %s296 = smul.u32 2, %s26
        %p297 = scmp.lt.s32.totalorder %s296, 1
        %s298 = scalar_select %p297, %s296, 1
        %s299 = smul.addr %s298, 8
        %s300 = scalar_lea.vmem %s1, %s299
        %s301 = smul.u32 2, %s26
      $region16: #{maskclip_forward.1} parent=11 // pred_fallthru
        _
      // Predicated region
      $region17: #{maskclip_forward.1} parent=11 // pred_check
        %p302 = pneg %p103
      $region18: #{maskclip_forward.1} parent=11 // pred_check_branch
        %304 = sbr.rel (%p302) target = $region20
      $region19: #{maskclip_forward.1} parent=11 // pred_region
        _
      $region20: #{maskclip_forward.1} parent=11 // pred_fallthru
        _
      // Predicated region
      $region21: #{maskclip_forward.1} parent=11 // pred_check
        %p305 = pneg %p124
      $region22: #{maskclip_forward.1} parent=11 // pred_check_branch
        %307 = sbr.rel (%p305) target = $region24
      $region23: #{maskclip_forward.1} parent=11 // pred_region
        _
      $region24: #{maskclip_forward.1} parent=11 // pred_fallthru
        _
      // Predicated region
      $region25: #{maskclip_forward.1} parent=11 // pred_check
        %p308 = pneg %p145
      $region26: #{maskclip_forward.1} parent=11 // pred_check_branch
        %310 = sbr.rel (%p308) target = $region28
      $region27: #{maskclip_forward.1} parent=11 // pred_region
        _
      $region28: #{maskclip_forward.1} parent=11 // pred_fallthru
        _
      // Predicated region
      $region29: #{maskclip_forward.1} parent=11 // pred_check
        %p311 = pneg %p166
      $region30: #{maskclip_forward.1} parent=11 // pred_check_branch
        %313 = sbr.rel (%p311) target = $region32
      $region31: #{maskclip_forward.1} parent=11 // pred_region
        _
      $region32: #{maskclip_forward.1} parent=11 // pred_fallthru
        _
      // Predicated region
      $region33: #{maskclip_forward.1} parent=11 // pred_check
        %p314 = pneg %p187
      $region34: #{maskclip_forward.1} parent=11 // pred_check_branch
        %316 = sbr.rel (%p314) target = $region36
      $region35: #{maskclip_forward.1} parent=11 // pred_region
        _
      $region36: #{maskclip_forward.1} parent=11 // pred_fallthru
        _
      // Predicated region
      $region37: #{maskclip_forward.1} parent=11 // pred_check
        %p317 = pneg %p208
      $region38: #{maskclip_forward.1} parent=11 // pred_check_branch
        %319 = sbr.rel (%p317) target = $region40
      $region39: #{maskclip_forward.1} parent=11 // pred_region
        _
      $region40: #{maskclip_forward.1} parent=11 // pred_fallthru
        _
      // Predicated region
      $region41: #{maskclip_forward.1} parent=11 // pred_check
        %p320 = pneg %p229
      $region42: #{maskclip_forward.1} parent=11 // pred_check_branch
        %322 = sbr.rel (%p320) target = $region44
      $region43: #{maskclip_forward.1} parent=11 // pred_region
        _
      $region44: #{maskclip_forward.1} parent=11 // pred_fallthru
        _
      // Predicated region
      $region45: #{maskclip_forward.1} parent=11 // pred_check
        %p323 = pneg %p250
      $region46: #{maskclip_forward.1} parent=11 // pred_check_branch
        %325 = sbr.rel (%p323) target = $region48
      $region47: #{maskclip_forward.1} parent=11 // pred_region
        _
      $region48: #{maskclip_forward.1} parent=11 // pred_fallthru
        _
    $region12: #{maskclip_forward.1} parent=5 // pred_fallthru
      _
    %p326 = scmp.lt.s32.totalorder %s16, 2
    // Predicated region
    $region49: #{maskclip_forward.1} parent=5 // pred_check
      %p327 = pneg %p326
    $region50: #{maskclip_forward.1} parent=5 // pred_check_branch
      %329 = sbr.rel (%p327) target = $region52
    $region51: #{maskclip_forward.1} parent=5 // pred_region
      // Predicated region
      $region53: #{maskclip_forward.1} parent=51 // pred_check
        %p330 = pneg %p50
      $region54: #{maskclip_forward.1} parent=51 // pred_check_branch
        %332 = sbr.rel (%p330) target = $region56
      $region55: #{maskclip_forward.1} parent=51 // pred_region
        %s333 = sadd.s32 %s23, %s24
        %s334 = smul.u32 2, %s333
        %p335 = scmp.lt.s32.totalorder %s334, 3
        %s336 = scalar_select %p335, %s334, 3
        %s337 = smul.addr %s336, 2
        %s338 = smul.addr %s337, 4
        %s339 = scalar_lea.vmem %s0, %s338
        %s340 = sadd.s32 %s23, %s24
        %s341 = smul.u32 2, %s340
      $region56: #{maskclip_forward.1} parent=51 // pred_fallthru
        _
    $region52: #{maskclip_forward.1} parent=5 // pred_fallthru
      _
    %p342 = scmp.le.s32.totalorder 1, %s16
    %p343 = scmp.lt.s32.totalorder %s16, 3
    %p344 = pnand %p342, %p343
    %p345 = pneg %p344
    // Predicated region
    $region57: #{maskclip_forward.1} parent=5 // pred_check
      _
    $region58: #{maskclip_forward.1} parent=5 // pred_check_branch
      %347 = sbr.rel (%p344) target = $region60
    $region59: #{maskclip_forward.1} parent=5 // pred_region
      %s348 = ssub.s32 %s16, 1
      %s349 = sadd.s32 %s25, %s26
      %s350 = smul.u32 2, %s349
      %p351 = scmp.lt.s32.totalorder %s350, 3
      %s352 = scalar_select %p351, %s350, 3
      %s353 = smul.addr %s352, 2
      %s354 = smul.addr %s353, 4
      %s355 = scalar_lea.vmem %s0, %s354
      %p356 = pneg %p56
      %p357 = pneg %p53
      %s358 = smul.u32 2, %s26
      %p359 = scmp.lt.s32.totalorder %s358, 1
      %s360 = scalar_select %p359, %s358, 1
      %s361 = smul.addr %s360, 8
      %s362 = scalar_lea.vmem %s1, %s361
      %p363 = pneg %p82
      %p364 = pneg %p79
      %p365 = pneg %p103
      %p366 = pneg %p100
      %p367 = pneg %p124
      %p368 = pneg %p121
      %p369 = pneg %p145
      %p370 = pneg %p142
      %p371 = pneg %p166
      %p372 = pneg %p163
      %p373 = pneg %p187
      %p374 = pneg %p184
      %p375 = pneg %p208
      %p376 = pneg %p205
      %p377 = pneg %p229
      %p378 = pneg %p226
      %p379 = pneg %p250
      %p380 = pneg %p247
      %p381 = pneg %p278
      %p382 = pneg %p275
      %s383 = sadd.s32 %s25, %s26
      %s384 = smul.u32 2, %s383
      %p385 = scmp.lt.s32.totalorder %s384, 3
      %s386 = scalar_select %p385, %s384, 3
      %s387 = smul.addr %s386, 4
      %s388 = scalar_lea.vmem %s10, %s387
      %s389 = sadd.s32 %s25, %s26
      %s390 = smul.u32 2, %s389
      %p391 = scmp.lt.s32.totalorder %s390, 3
      %s392 = scalar_select %p391, %s390, 3
      %s393 = smul.addr %s392, 2
      %s394 = smul.addr %s393, 4
      %s395 = scalar_lea.vmem %s0, %s394
      %s396 = sadd.s32 %s25, %s26
      %s397 = smul.u32 2, %s396
      %s398 = smul.u32 2, %s26
      %p399 = scmp.lt.s32.totalorder %s398, 1
      %s400 = scalar_select %p399, %s398, 1
      %s401 = smul.addr %s400, 8
      %s402 = scalar_lea.vmem %s1, %s401
      %s403 = smul.u32 2, %s26
      %s404 = sadd.s32 %s25, %s26
      %s405 = smul.u32 2, %s404
      %p406 = scmp.lt.s32.totalorder %s405, 3
      %s407 = scalar_select %p406, %s405, 3
      %s408 = smul.addr %s407, 4
      %s409 = scalar_lea.vmem %s10, %s408
      %s410 = sadd.s32 %s25, %s26
      %s411 = smul.u32 2, %s410
      %v412 = vld [vmem:[%s9] sm:$0x1]
      %v413 = vld [vmem:[%s9 + $0x1] sm:$0x1]
      %v414 = vld [vmem:[%s9 + $0x2] sm:$0x1]
      %v415 = vld [vmem:[%s9 + $0x3] sm:$0x1]
      %v416 = vld [vmem:[%s9 + $0x4] sm:$0x1]
      %v417 = vld [vmem:[%s9 + $0x5] sm:$0x1]
      %v418 = vld [vmem:[%s9 + $0x6] sm:$0x1]
      %v419 = vld [vmem:[%s9 + $0x7] sm:$0x1]
      %v420 = vld [vmem:[%s395] sm:$0xff]
      %v421 = vld [vmem:[%s395 + $0x8] sm:$0xff]
      %v422 = vld [vmem:[%s2] sm:$0xf]
      %v423 = vld [vmem:[%s2 + $0x4] sm:$0xf]
      %v424 = vld [vmem:[%s2 + $0x8] sm:$0xf]
      %v425 = vld [vmem:[%s2 + $0xc] sm:$0xf]
      %v426 = vld [vmem:[%s2 + $0x10] sm:$0xf]
      %v427 = vld [vmem:[%s2 + $0x14] sm:$0xf]
      %v428 = vld [vmem:[%s2 + $0x18] sm:$0xf]
      %v429 = vld [vmem:[%s2 + $0x1c] sm:$0xf]
      %v430 = vld [vmem:[%s2 + $0x20] sm:$0xf]
      %v431 = vld [vmem:[%s2 + $0x24] sm:$0xf]
      %v432 = vld [vmem:[%s2 + $0x28] sm:$0xf]
      %v433 = vld [vmem:[%s2 + $0x2c] sm:$0xf]
      %v434 = vld [vmem:[%s2 + $0x30] sm:$0xf]
      %v435 = vld [vmem:[%s2 + $0x34] sm:$0xf]
      %v436 = vld [vmem:[%s2 + $0x38] sm:$0xf]
      %v437 = vld [vmem:[%s2 + $0x3c] sm:$0xf]
      %v438 = vld [vmem:[%s2 + $0x40] sm:$0xf]
      %v439 = vld [vmem:[%s2 + $0x44] sm:$0xf]
      %v440 = vld [vmem:[%s2 + $0x48] sm:$0xf]
      %v441 = vld [vmem:[%s2 + $0x4c] sm:$0xf]
      %v442 = vld [vmem:[%s2 + $0x50] sm:$0xf]
      %v443 = vld [vmem:[%s2 + $0x54] sm:$0xf]
      %v444 = vld [vmem:[%s2 + $0x58] sm:$0xf]
      %v445 = vld [vmem:[%s2 + $0x5c] sm:$0xf]
      %v446 = vld [vmem:[%s2 + $0x60] sm:$0xf]
      %v447 = vld [vmem:[%s2 + $0x64] sm:$0xf]
      %v448 = vld [vmem:[%s2 + $0x68] sm:$0xf]
      %v449 = vld [vmem:[%s2 + $0x6c] sm:$0xf]
      %v450 = vld [vmem:[%s2 + $0x70] sm:$0xf]
      %v451 = vld [vmem:[%s2 + $0x74] sm:$0xf]
      %v452 = vld [vmem:[%s2 + $0x78] sm:$0xf]
      %v453 = vld [vmem:[%s2 + $0x7c] sm:$0xf]
      %v454 = vld [vmem:[%s402] sm:$0xff]
      %v455 = vld [vmem:[%s402 + $0x8] sm:$0xff]
      %v458 = vunpack.c.l.b16 %v420
      %v459 = vunpack.c.h.b16 %v420
      %v460 = vunpack.c.l.b16 %v421
      %v461 = vunpack.c.h.b16 %v421
      %v462 = vpack.c.b16 %v460, %v458
      %v463 = vpack.c.b16 %v461, %v459
      %v498 = vunpack.c.l.b16 %v422
      %v499 = vunpack.c.l.b16 %v423
      %v500 = vunpack.c.l.b16 %v424
      %v501 = vunpack.c.l.b16 %v425
      %v502 = vunpack.c.l.b16 %v426
      %v503 = vunpack.c.l.b16 %v427
      %v504 = vunpack.c.l.b16 %v428
      %v505 = vunpack.c.l.b16 %v429
      %v506 = vunpack.c.l.b16 %v430
      %v507 = vunpack.c.l.b16 %v431
      %v508 = vunpack.c.l.b16 %v432
      %v509 = vunpack.c.l.b16 %v433
      %v510 = vunpack.c.l.b16 %v434
      %v511 = vunpack.c.l.b16 %v435
      %v512 = vunpack.c.l.b16 %v436
      %v513 = vunpack.c.l.b16 %v437
      %v514 = vunpack.c.l.b16 %v438
      %v515 = vunpack.c.l.b16 %v439
      %v516 = vunpack.c.l.b16 %v440
      %v517 = vunpack.c.l.b16 %v441
      %v518 = vunpack.c.l.b16 %v442
      %v519 = vunpack.c.l.b16 %v443
      %v520 = vunpack.c.l.b16 %v444
      %v521 = vunpack.c.l.b16 %v445
      %v522 = vunpack.c.l.b16 %v446
      %v523 = vunpack.c.l.b16 %v447
      %v524 = vunpack.c.l.b16 %v448
      %v525 = vunpack.c.l.b16 %v449
      %v526 = vunpack.c.l.b16 %v450
      %v527 = vunpack.c.l.b16 %v451
      %v528 = vunpack.c.l.b16 %v452
      %v529 = vunpack.c.l.b16 %v453
      %v530 = vpack.c.b16 %v499, %v498
      %v531 = vpack.c.b16 %v501, %v500
      %v532 = vpack.c.b16 %v503, %v502
      %v533 = vpack.c.b16 %v505, %v504
      %v534 = vpack.c.b16 %v507, %v506
      %v535 = vpack.c.b16 %v509, %v508
      %v536 = vpack.c.b16 %v511, %v510
      %v537 = vpack.c.b16 %v513, %v512
      %v538 = vpack.c.b16 %v515, %v514
      %v539 = vpack.c.b16 %v517, %v516
      %v540 = vpack.c.b16 %v519, %v518
      %v541 = vpack.c.b16 %v521, %v520
      %v542 = vpack.c.b16 %v523, %v522
      %v543 = vpack.c.b16 %v525, %v524
      %v544 = vpack.c.b16 %v527, %v526
      %v545 = vpack.c.b16 %v529, %v528
      %562 = vmatpush.bf16.msra.mxu0 %v537
      %563 = vmatpush.bf16.msra.mxu0 %v536
      %564 = vmatpush.bf16.msra.mxu0 %v535
      %565 = vmatpush.bf16.msra.mxu0 %v534
      %566 = vmatpush.bf16.msra.mxu0 %v533
      %567 = vmatpush.bf16.msra.mxu0 %v532
      %568 = vmatpush.bf16.msra.mxu0 %v531
      %569 = vmatpush.bf16.msra.mxu0 %v530
      %570 = vmatmul.bf16.gmra.mxu0 %v462
      %v571 = vpop.f32.mrf.mxu0
      %v572 = vadd.f32 %v454, %v571
      %v573 = vpop.f32.mrf.mxu0
      %v574 = vadd.f32 %v455, %v573
      %575 = vdwg.mxu0
      %576 = vmatpush.bf16.msra.mxu0 %v545
      %577 = vmatpush.bf16.msra.mxu0 %v544
      %578 = vmatpush.bf16.msra.mxu0 %v543
      %579 = vmatpush.bf16.msra.mxu0 %v542
      %580 = vmatpush.bf16.msra.mxu0 %v541
      %581 = vmatpush.bf16.msra.mxu0 %v540
      %582 = vmatpush.bf16.msra.mxu0 %v539
      %583 = vmatpush.bf16.msra.mxu0 %v538
      %584 = vmatmul.bf16.gmra.mxu0 %v463
      %v585 = vpop.f32.mrf.mxu0
      %v586 = vadd.f32 %v572, %v585
      %v587 = vpop.f32.mrf.mxu0
      %v588 = vadd.f32 %v574, %v587
      %589 = vdwg.mxu0
      %590 = vadd.xlane.f32.xlu0 %v586
      %v591 = vpop.xlane.xlu0 %590
      %592 = vadd.xlane.f32.xlu0 %v588
      %v593 = vpop.xlane.xlu0 %592
      %v594 = vrcp.pop 128.0
      %v595 = vmul.f32 128.0, %v594
      %v596 = vsub.f32 1.0, %v595
      %v597 = vmul.f32 %v594, %v596
      %v598 = vadd.f32 %v594, %v597
      %vm599 = vweird.f32 %v594
      %v600 = vsel %vm599, %v594, %v598
      %v601 = vmul.f32 %v591, %v600
      %v602 = vmul.f32 %v593, %v600
      %v603 = vsub.f32 %v586, %v601
      %v604 = vsub.f32 %v588, %v602
      %v605 = vmul.f32 %v603, %v603
      %v606 = vmul.f32 %v604, %v604
      %607 = vadd.xlane.f32.xlu0 %v605
      %v608 = vpop.xlane.xlu0 %607
      %609 = vadd.xlane.f32.xlu0 %v606
      %v610 = vpop.xlane.xlu0 %609
      %v611 = vmul.f32 %v608, %v600
      %v612 = vmul.f32 %v610, %v600
      %v613 = vadd.f32 %v611, 1e-05
      %v614 = vadd.f32 %v612, 1e-05
      %v615 = vrsqrt.pop %v613
      %v616 = vmul.f32 %v615, %v613
      %v617 = vmul.f32 %v616, %v615
      %v618 = vmul.f32 0.5, %v617
      %v619 = vsub.f32 1.5, %v618
      %v620 = vmul.f32 %v615, %v619
      %vm621 = vweird.f32 %v613
      %vm622 = vweird.f32 %v615
      %vm623 = vmor %vm621, %vm622
      %v624 = vsel %vm623, %v615, %v620
      %v625 = vrsqrt.pop %v614
      %v626 = vmul.f32 %v625, %v614
      %v627 = vmul.f32 %v626, %v625
      %v628 = vmul.f32 0.5, %v627
      %v629 = vsub.f32 1.5, %v628
      %v630 = vmul.f32 %v625, %v629
      %vm631 = vweird.f32 %v614
      %vm632 = vweird.f32 %v625
      %vm633 = vmor %vm631, %vm632
      %v634 = vsel %vm633, %v625, %v630
      %v635 = vmul.f32 %v603, %v624
      %v636 = vmul.f32 %v604, %v634
      %v637 = vperm.slane %v412, 0
      %v638 = vmul.f32 %v635, %v637
      %v639 = vmul.f32 %v636, %v637
      %v640 = vperm.slane %v413, 0
      %v641 = vadd.f32 %v638, %v640
      %v642 = vadd.f32 %v639, %v640
      %v643 = vld [vmem:[%s3] sm:$0xf]
      %v644 = vld [vmem:[%s3 + $0x4] sm:$0xf]
      %v645 = vld [vmem:[%s3 + $0x8] sm:$0xf]
      %v646 = vld [vmem:[%s3 + $0xc] sm:$0xf]
      %v647 = vld [vmem:[%s3 + $0x10] sm:$0xf]
      %v648 = vld [vmem:[%s3 + $0x14] sm:$0xf]
      %v649 = vld [vmem:[%s3 + $0x18] sm:$0xf]
      %v650 = vld [vmem:[%s3 + $0x1c] sm:$0xf]
      %v651 = vld [vmem:[%s3 + $0x20] sm:$0xf]
      %v652 = vld [vmem:[%s3 + $0x24] sm:$0xf]
      %v653 = vld [vmem:[%s3 + $0x28] sm:$0xf]
      %v654 = vld [vmem:[%s3 + $0x2c] sm:$0xf]
      %v655 = vld [vmem:[%s3 + $0x30] sm:$0xf]
      %v656 = vld [vmem:[%s3 + $0x34] sm:$0xf]
      %v657 = vld [vmem:[%s3 + $0x38] sm:$0xf]
      %v658 = vld [vmem:[%s3 + $0x3c] sm:$0xf]
      %v659 = vpack.c.bf16 %v642, %v641
      %v660 = vperm.slane %v414, 0
      %v677 = vunpack.c.l.b16 %v643
      %v678 = vunpack.c.l.b16 %v644
      %v679 = vunpack.c.l.b16 %v645
      %v680 = vunpack.c.l.b16 %v646
      %v681 = vunpack.c.l.b16 %v647
      %v682 = vunpack.c.l.b16 %v648
      %v683 = vunpack.c.l.b16 %v649
      %v684 = vunpack.c.l.b16 %v650
      %v685 = vunpack.c.l.b16 %v651
      %v686 = vunpack.c.l.b16 %v652
      %v687 = vunpack.c.l.b16 %v653
      %v688 = vunpack.c.l.b16 %v654
      %v689 = vunpack.c.l.b16 %v655
      %v690 = vunpack.c.l.b16 %v656
      %v691 = vunpack.c.l.b16 %v657
      %v692 = vunpack.c.l.b16 %v658
      %v693 = vpack.c.b16 %v678, %v677
      %v694 = vpack.c.b16 %v680, %v679
      %v695 = vpack.c.b16 %v682, %v681
      %v696 = vpack.c.b16 %v684, %v683
      %v697 = vpack.c.b16 %v686, %v685
      %v698 = vpack.c.b16 %v688, %v687
      %v699 = vpack.c.b16 %v690, %v689
      %v700 = vpack.c.b16 %v692, %v691
      %709 = vmatpush.bf16.msra.mxu0 %v700
      %710 = vmatpush.bf16.msra.mxu0 %v699
      %711 = vmatpush.bf16.msra.mxu0 %v698
      %712 = vmatpush.bf16.msra.mxu0 %v697
      %713 = vmatpush.bf16.msra.mxu0 %v696
      %714 = vmatpush.bf16.msra.mxu0 %v695
      %715 = vmatpush.bf16.msra.mxu0 %v694
      %716 = vmatpush.bf16.msra.mxu0 %v693
      %717 = vmatmul.bf16.gmra.mxu0 %v659
      %v718 = vpop.f32.mrf.mxu0
      %v719 = vadd.f32 %v660, %v718
      %v720 = vpop.f32.mrf.mxu0
      %v721 = vadd.f32 %v660, %v720
      %722 = vdwg.mxu0
      %v723 = vadd.f32 %v719, %v586
      %v724 = vadd.f32 %v721, %v588
      %725 = vadd.xlane.f32.xlu0 %v723
      %v726 = vpop.xlane.xlu0 %725
      %727 = vadd.xlane.f32.xlu0 %v724
      %v728 = vpop.xlane.xlu0 %727
      %v729 = vmul.f32 %v726, %v600
      %v730 = vmul.f32 %v728, %v600
      %v731 = vsub.f32 %v723, %v729
      %v732 = vsub.f32 %v724, %v730
      %v733 = vmul.f32 %v731, %v731
      %v734 = vmul.f32 %v732, %v732
      %735 = vadd.xlane.f32.xlu0 %v733
      %v736 = vpop.xlane.xlu0 %735
      %737 = vadd.xlane.f32.xlu0 %v734
      %v738 = vpop.xlane.xlu0 %737
      %v739 = vmul.f32 %v736, %v600
      %v740 = vmul.f32 %v738, %v600
      %v741 = vadd.f32 %v739, 1e-05
      %v742 = vadd.f32 %v740, 1e-05
      %v743 = vrsqrt.pop %v741
      %v744 = vmul.f32 %v743, %v741
      %v745 = vmul.f32 %v744, %v743
      %v746 = vmul.f32 0.5, %v745
      %v747 = vsub.f32 1.5, %v746
      %v748 = vmul.f32 %v743, %v747
      %vm749 = vweird.f32 %v741
      %vm750 = vweird.f32 %v743
      %vm751 = vmor %vm749, %vm750
      %v752 = vsel %vm751, %v743, %v748
      %v753 = vrsqrt.pop %v742
      %v754 = vmul.f32 %v753, %v742
      %v755 = vmul.f32 %v754, %v753
      %v756 = vmul.f32 0.5, %v755
      %v757 = vsub.f32 1.5, %v756
      %v758 = vmul.f32 %v753, %v757
      %vm759 = vweird.f32 %v742
      %vm760 = vweird.f32 %v753
      %vm761 = vmor %vm759, %vm760
      %v762 = vsel %vm761, %v753, %v758
      %v763 = vmul.f32 %v731, %v752
      %v764 = vmul.f32 %v732, %v762
      %v765 = vperm.slane %v415, 0
      %v766 = vmul.f32 %v763, %v765
      %v767 = vmul.f32 %v764, %v765
      %v768 = vperm.slane %v416, 0
      %v769 = vadd.f32 %v766, %v768
      %v770 = vadd.f32 %v767, %v768
      %v771 = vld [vmem:[%s4] sm:$0xff]
      %v772 = vld [vmem:[%s4 + $0x8] sm:$0xff]
      %v773 = vld [vmem:[%s4 + $0x10] sm:$0xff]
      %v774 = vld [vmem:[%s4 + $0x18] sm:$0xff]
      %v775 = vld [vmem:[%s4 + $0x20] sm:$0xff]
      %v776 = vld [vmem:[%s4 + $0x28] sm:$0xff]
      %v777 = vld [vmem:[%s4 + $0x30] sm:$0xff]
      %v778 = vld [vmem:[%s4 + $0x38] sm:$0xff]
      %v779 = vld [vmem:[%s4 + $0x40] sm:$0xff]
      %v780 = vld [vmem:[%s4 + $0x48] sm:$0xff]
      %v781 = vld [vmem:[%s4 + $0x50] sm:$0xff]
      %v782 = vld [vmem:[%s4 + $0x58] sm:$0xff]
      %v783 = vld [vmem:[%s4 + $0x60] sm:$0xff]
      %v784 = vld [vmem:[%s4 + $0x68] sm:$0xff]
      %v785 = vld [vmem:[%s4 + $0x70] sm:$0xff]
      %v786 = vld [vmem:[%s4 + $0x78] sm:$0xff]
      %v787 = vld [vmem:[%s4 + $0x80] sm:$0xff]
      %v788 = vld [vmem:[%s4 + $0x88] sm:$0xff]
      %v789 = vld [vmem:[%s4 + $0x90] sm:$0xff]
      %v790 = vld [vmem:[%s4 + $0x98] sm:$0xff]
      %v791 = vld [vmem:[%s4 + $0xa0] sm:$0xff]
      %v792 = vld [vmem:[%s4 + $0xa8] sm:$0xff]
      %v793 = vld [vmem:[%s4 + $0xb0] sm:$0xff]
      %v794 = vld [vmem:[%s4 + $0xb8] sm:$0xff]
      %v795 = vld [vmem:[%s4 + $0xc0] sm:$0xff]
      %v796 = vld [vmem:[%s4 + $0xc8] sm:$0xff]
      %v797 = vld [vmem:[%s4 + $0xd0] sm:$0xff]
      %v798 = vld [vmem:[%s4 + $0xd8] sm:$0xff]
      %v799 = vld [vmem:[%s4 + $0xe0] sm:$0xff]
      %v800 = vld [vmem:[%s4 + $0xe8] sm:$0xff]
      %v801 = vld [vmem:[%s4 + $0xf0] sm:$0xff]
      %v802 = vld [vmem:[%s4 + $0xf8] sm:$0xff]
      %v803 = vpack.c.bf16 %v770, %v769
      %v804 = vld [vmem:[%s5] sm:$0xf]
      %v806 = vperm.slane %v804, 0
      %v807 = vperm.slane %v804, 1
      %v808 = vperm.slane %v804, 2
      %v809 = vperm.slane %v804, 3
      %v846 = vunpack.c.l.b16 %v771
      %v847 = vunpack.c.h.b16 %v771
      %v848 = vunpack.c.l.b16 %v772
      %v849 = vunpack.c.h.b16 %v772
      %v850 = vunpack.c.l.b16 %v773
      %v851 = vunpack.c.h.b16 %v773
      %v852 = vunpack.c.l.b16 %v774
      %v853 = vunpack.c.h.b16 %v774
      %v854 = vunpack.c.l.b16 %v775
      %v855 = vunpack.c.h.b16 %v775
      %v856 = vunpack.c.l.b16 %v776
      %v857 = vunpack.c.h.b16 %v776
      %v858 = vunpack.c.l.b16 %v777
      %v859 = vunpack.c.h.b16 %v777
      %v860 = vunpack.c.l.b16 %v778
      %v861 = vunpack.c.h.b16 %v778
      %v862 = vunpack.c.l.b16 %v779
      %v863 = vunpack.c.h.b16 %v779
      %v864 = vunpack.c.l.b16 %v780
      %v865 = vunpack.c.h.b16 %v780
      %v866 = vunpack.c.l.b16 %v781
      %v867 = vunpack.c.h.b16 %v781
      %v868 = vunpack.c.l.b16 %v782
      %v869 = vunpack.c.h.b16 %v782
      %v870 = vunpack.c.l.b16 %v783
      %v871 = vunpack.c.h.b16 %v783
      %v872 = vunpack.c.l.b16 %v784
      %v873 = vunpack.c.h.b16 %v784
      %v874 = vunpack.c.l.b16 %v785
      %v875 = vunpack.c.h.b16 %v785
      %v876 = vunpack.c.l.b16 %v786
      %v877 = vunpack.c.h.b16 %v786
      %v878 = vunpack.c.l.b16 %v787
      %v879 = vunpack.c.h.b16 %v787
      %v880 = vunpack.c.l.b16 %v788
      %v881 = vunpack.c.h.b16 %v788
      %v882 = vunpack.c.l.b16 %v789
      %v883 = vunpack.c.h.b16 %v789
      %v884 = vunpack.c.l.b16 %v790
      %v885 = vunpack.c.h.b16 %v790
      %v886 = vunpack.c.l.b16 %v791
      %v887 = vunpack.c.h.b16 %v791
      %v888 = vunpack.c.l.b16 %v792
      %v889 = vunpack.c.h.b16 %v792
      %v890 = vunpack.c.l.b16 %v793
      %v891 = vunpack.c.h.b16 %v793
      %v892 = vunpack.c.l.b16 %v794
      %v893 = vunpack.c.h.b16 %v794
      %v894 = vunpack.c.l.b16 %v795
      %v895 = vunpack.c.h.b16 %v795
      %v896 = vunpack.c.l.b16 %v796
      %v897 = vunpack.c.h.b16 %v796
      %v898 = vunpack.c.l.b16 %v797
      %v899 = vunpack.c.h.b16 %v797
      %v900 = vunpack.c.l.b16 %v798
      %v901 = vunpack.c.h.b16 %v798
      %v902 = vunpack.c.l.b16 %v799
      %v903 = vunpack.c.h.b16 %v799
      %v904 = vunpack.c.l.b16 %v800
      %v905 = vunpack.c.h.b16 %v800
      %v906 = vunpack.c.l.b16 %v801
      %v907 = vunpack.c.h.b16 %v801
      %v908 = vunpack.c.l.b16 %v802
      %v909 = vunpack.c.h.b16 %v802
      %v910 = vpack.c.b16 %v850, %v846
      %v911 = vpack.c.b16 %v851, %v847
      %v912 = vpack.c.b16 %v852, %v848
      %v913 = vpack.c.b16 %v853, %v849
      %v914 = vpack.c.b16 %v858, %v854
      %v915 = vpack.c.b16 %v859, %v855
      %v916 = vpack.c.b16 %v860, %v856
      %v917 = vpack.c.b16 %v861, %v857
      %v918 = vpack.c.b16 %v866, %v862
      %v919 = vpack.c.b16 %v867, %v863
      %v920 = vpack.c.b16 %v868, %v864
      %v921 = vpack.c.b16 %v869, %v865
      %v922 = vpack.c.b16 %v874, %v870
      %v923 = vpack.c.b16 %v875, %v871
      %v924 = vpack.c.b16 %v876, %v872
      %v925 = vpack.c.b16 %v877, %v873
      %v926 = vpack.c.b16 %v882, %v878
      %v927 = vpack.c.b16 %v883, %v879
      %v928 = vpack.c.b16 %v884, %v880
      %v929 = vpack.c.b16 %v885, %v881
      %v930 = vpack.c.b16 %v890, %v886
      %v931 = vpack.c.b16 %v891, %v887
      %v932 = vpack.c.b16 %v892, %v888
      %v933 = vpack.c.b16 %v893, %v889
      %v934 = vpack.c.b16 %v898, %v894
      %v935 = vpack.c.b16 %v899, %v895
      %v936 = vpack.c.b16 %v900, %v896
      %v937 = vpack.c.b16 %v901, %v897
      %v938 = vpack.c.b16 %v906, %v902
      %v939 = vpack.c.b16 %v907, %v903
      %v940 = vpack.c.b16 %v908, %v904
      %v941 = vpack.c.b16 %v909, %v905
      %974 = vmatpush.bf16.msra.mxu0 %v938
      %975 = vmatpush.bf16.msra.mxu0 %v934
      %976 = vmatpush.bf16.msra.mxu0 %v930
      %977 = vmatpush.bf16.msra.mxu0 %v926
      %978 = vmatpush.bf16.msra.mxu0 %v922
      %979 = vmatpush.bf16.msra.mxu0 %v918
      %980 = vmatpush.bf16.msra.mxu0 %v914
      %981 = vmatpush.bf16.msra.mxu0 %v910
      %982 = vmatmul.bf16.gmra.mxu0 %v803
      %v983 = vpop.f32.mrf.mxu0
      %v984 = vadd.f32 %v806, %v983
      %v985 = vpop.f32.mrf.mxu0
      %v986 = vadd.f32 %v806, %v985
      %987 = vdwg.mxu0
      %988 = vmatpush.bf16.msra.mxu0 %v939
      %989 = vmatpush.bf16.msra.mxu0 %v935
      %990 = vmatpush.bf16.msra.mxu0 %v931
      %991 = vmatpush.bf16.msra.mxu0 %v927
      %992 = vmatpush.bf16.msra.mxu0 %v923
      %993 = vmatpush.bf16.msra.mxu0 %v919
      %994 = vmatpush.bf16.msra.mxu0 %v915
      %995 = vmatpush.bf16.msra.mxu0 %v911
      %996 = vmatmul.bf16.gmra.mxu0 %v803
      %v997 = vpop.f32.mrf.mxu0
      %v998 = vadd.f32 %v807, %v997
      %v999 = vpop.f32.mrf.mxu0
      %v1000 = vadd.f32 %v807, %v999
      %1001 = vdwg.mxu0
      %1002 = vmatpush.bf16.msra.mxu0 %v940
      %1003 = vmatpush.bf16.msra.mxu0 %v936
      %1004 = vmatpush.bf16.msra.mxu0 %v932
      %1005 = vmatpush.bf16.msra.mxu0 %v928
      %1006 = vmatpush.bf16.msra.mxu0 %v924
      %1007 = vmatpush.bf16.msra.mxu0 %v920
      %1008 = vmatpush.bf16.msra.mxu0 %v916
      %1009 = vmatpush.bf16.msra.mxu0 %v912
      %1010 = vmatmul.bf16.gmra.mxu0 %v803
      %v1011 = vpop.f32.mrf.mxu0
      %v1012 = vadd.f32 %v808, %v1011
      %v1013 = vpop.f32.mrf.mxu0
      %v1014 = vadd.f32 %v808, %v1013
      %1015 = vdwg.mxu0
      %1016 = vmatpush.bf16.msra.mxu0 %v941
      %1017 = vmatpush.bf16.msra.mxu0 %v937
      %1018 = vmatpush.bf16.msra.mxu0 %v933
      %1019 = vmatpush.bf16.msra.mxu0 %v929
      %1020 = vmatpush.bf16.msra.mxu0 %v925
      %1021 = vmatpush.bf16.msra.mxu0 %v921
      %1022 = vmatpush.bf16.msra.mxu0 %v917
      %1023 = vmatpush.bf16.msra.mxu0 %v913
      %1024 = vmatmul.bf16.gmra.mxu0 %v803
      %v1025 = vpop.f32.mrf.mxu0
      %v1026 = vadd.f32 %v809, %v1025
      %v1027 = vpop.f32.mrf.mxu0
      %v1028 = vadd.f32 %v809, %v1027
      %1029 = vdwg.mxu0
      %v1030 = vmul.f32 %v984, 1.702
      %v1031 = vmul.f32 %v998, 1.702
      %v1032 = vmul.f32 %v1012, 1.702
      %v1033 = vmul.f32 %v1026, 1.702
      %v1034 = vmul.f32 %v986, 1.702
      %v1035 = vmul.f32 %v1000, 1.702
      %v1036 = vmul.f32 %v1014, 1.702
      %v1037 = vmul.f32 %v1028, 1.702
      %v1038 = vxor.u32 %v1030, 2147483648
      %v1039 = vxor.u32 %v1031, 2147483648
      %v1040 = vxor.u32 %v1032, 2147483648
      %v1041 = vxor.u32 %v1033, 2147483648
      %v1042 = vxor.u32 %v1034, 2147483648
      %v1043 = vxor.u32 %v1035, 2147483648
      %v1044 = vxor.u32 %v1036, 2147483648
      %v1045 = vxor.u32 %v1037, 2147483648
      %v1046 = vmul.f32 %v1038, 1.442695
      %v1047 = vpow.pop %v1046
      %v1048 = vmul.f32 %v1039, 1.442695
      %v1049 = vpow.pop %v1048
      %v1050 = vmul.f32 %v1040, 1.442695
      %v1051 = vpow.pop %v1050
      %v1052 = vmul.f32 %v1041, 1.442695
      %v1053 = vpow.pop %v1052
      %v1054 = vmul.f32 %v1042, 1.442695
      %v1055 = vpow.pop %v1054
      %v1056 = vmul.f32 %v1043, 1.442695
      %v1057 = vpow.pop %v1056
      %v1058 = vmul.f32 %v1044, 1.442695
      %v1059 = vpow.pop %v1058
      %v1060 = vmul.f32 %v1045, 1.442695
      %v1061 = vpow.pop %v1060
      %v1062 = vadd.f32 %v1047, 1.0
      %v1063 = vadd.f32 %v1049, 1.0
      %v1064 = vadd.f32 %v1051, 1.0
      %v1065 = vadd.f32 %v1053, 1.0
      %v1066 = vadd.f32 %v1055, 1.0
      %v1067 = vadd.f32 %v1057, 1.0
      %v1068 = vadd.f32 %v1059, 1.0
      %v1069 = vadd.f32 %v1061, 1.0
      %v1070 = vrcp.pop %v1062
      %v1071 = vmul.f32 %v1062, %v1070
      %v1072 = vsub.f32 1.0, %v1071
      %v1073 = vmul.f32 %v1070, %v1072
      %v1074 = vadd.f32 %v1070, %v1073
      %vm1075 = vweird.f32 %v1062
      %vm1076 = vweird.f32 %v1070
      %vm1077 = vmor %vm1075, %vm1076
      %v1078 = vsel %vm1077, %v1070, %v1074
      %v1079 = vand.u32 2147483647, %v1062
      %vm1080 = vcmp.eq.f32.partialorder %v1079, 8.507059e+37
      %v1081 = vand.u32 %v1062, 2147483648
      %v1082 = vor.u32 1.1754944e-38, %v1081
      %v1083 = vsel %vm1080, %v1082, %v1078
      %v1084 = vmul.f32 1.0, %v1083
      %v1085 = vrcp.pop %v1063
      %v1086 = vmul.f32 %v1063, %v1085
      %v1087 = vsub.f32 1.0, %v1086
      %v1088 = vmul.f32 %v1085, %v1087
      %v1089 = vadd.f32 %v1085, %v1088
      %vm1090 = vweird.f32 %v1063
      %vm1091 = vweird.f32 %v1085
      %vm1092 = vmor %vm1090, %vm1091
      %v1093 = vsel %vm1092, %v1085, %v1089
      %v1094 = vand.u32 2147483647, %v1063
      %vm1095 = vcmp.eq.f32.partialorder %v1094, 8.507059e+37
      %v1096 = vand.u32 %v1063, 2147483648
      %v1097 = vor.u32 1.1754944e-38, %v1096
      %v1098 = vsel %vm1095, %v1097, %v1093
      %v1099 = vmul.f32 1.0, %v1098
      %v1100 = vrcp.pop %v1064
      %v1101 = vmul.f32 %v1064, %v1100
      %v1102 = vsub.f32 1.0, %v1101
      %v1103 = vmul.f32 %v1100, %v1102
      %v1104 = vadd.f32 %v1100, %v1103
      %vm1105 = vweird.f32 %v1064
      %vm1106 = vweird.f32 %v1100
      %vm1107 = vmor %vm1105, %vm1106
      %v1108 = vsel %vm1107, %v1100, %v1104
      %v1109 = vand.u32 2147483647, %v1064
      %vm1110 = vcmp.eq.f32.partialorder %v1109, 8.507059e+37
      %v1111 = vand.u32 %v1064, 2147483648
      %v1112 = vor.u32 1.1754944e-38, %v1111
      %v1113 = vsel %vm1110, %v1112, %v1108
      %v1114 = vmul.f32 1.0, %v1113
      %v1115 = vrcp.pop %v1065
      %v1116 = vmul.f32 %v1065, %v1115
      %v1117 = vsub.f32 1.0, %v1116
      %v1118 = vmul.f32 %v1115, %v1117
      %v1119 = vadd.f32 %v1115, %v1118
      %vm1120 = vweird.f32 %v1065
      %vm1121 = vweird.f32 %v1115
      %vm1122 = vmor %vm1120, %vm1121
      %v1123 = vsel %vm1122, %v1115, %v1119
      %v1124 = vand.u32 2147483647, %v1065
      %vm1125 = vcmp.eq.f32.partialorder %v1124, 8.507059e+37
      %v1126 = vand.u32 %v1065, 2147483648
      %v1127 = vor.u32 1.1754944e-38, %v1126
      %v1128 = vsel %vm1125, %v1127, %v1123
      %v1129 = vmul.f32 1.0, %v1128
      %v1130 = vrcp.pop %v1066
      %v1131 = vmul.f32 %v1066, %v1130
      %v1132 = vsub.f32 1.0, %v1131
      %v1133 = vmul.f32 %v1130, %v1132
      %v1134 = vadd.f32 %v1130, %v1133
      %vm1135 = vweird.f32 %v1066
      %vm1136 = vweird.f32 %v1130
      %vm1137 = vmor %vm1135, %vm1136
      %v1138 = vsel %vm1137, %v1130, %v1134
      %v1139 = vand.u32 2147483647, %v1066
      %vm1140 = vcmp.eq.f32.partialorder %v1139, 8.507059e+37
      %v1141 = vand.u32 %v1066, 2147483648
      %v1142 = vor.u32 1.1754944e-38, %v1141
      %v1143 = vsel %vm1140, %v1142, %v1138
      %v1144 = vmul.f32 1.0, %v1143
      %v1145 = vrcp.pop %v1067
      %v1146 = vmul.f32 %v1067, %v1145
      %v1147 = vsub.f32 1.0, %v1146
      %v1148 = vmul.f32 %v1145, %v1147
      %v1149 = vadd.f32 %v1145, %v1148
      %vm1150 = vweird.f32 %v1067
      %vm1151 = vweird.f32 %v1145
      %vm1152 = vmor %vm1150, %vm1151
      %v1153 = vsel %vm1152, %v1145, %v1149
      %v1154 = vand.u32 2147483647, %v1067
      %vm1155 = vcmp.eq.f32.partialorder %v1154, 8.507059e+37
      %v1156 = vand.u32 %v1067, 2147483648
      %v1157 = vor.u32 1.1754944e-38, %v1156
      %v1158 = vsel %vm1155, %v1157, %v1153
      %v1159 = vmul.f32 1.0, %v1158
      %v1160 = vrcp.pop %v1068
      %v1161 = vmul.f32 %v1068, %v1160
      %v1162 = vsub.f32 1.0, %v1161
      %v1163 = vmul.f32 %v1160, %v1162
      %v1164 = vadd.f32 %v1160, %v1163
      %vm1165 = vweird.f32 %v1068
      %vm1166 = vweird.f32 %v1160
      %vm1167 = vmor %vm1165, %vm1166
      %v1168 = vsel %vm1167, %v1160, %v1164
      %v1169 = vand.u32 2147483647, %v1068
      %vm1170 = vcmp.eq.f32.partialorder %v1169, 8.507059e+37
      %v1171 = vand.u32 %v1068, 2147483648
      %v1172 = vor.u32 1.1754944e-38, %v1171
      %v1173 = vsel %vm1170, %v1172, %v1168
      %v1174 = vmul.f32 1.0, %v1173
      %v1175 = vrcp.pop %v1069
      %v1176 = vmul.f32 %v1069, %v1175
      %v1177 = vsub.f32 1.0, %v1176
      %v1178 = vmul.f32 %v1175, %v1177
      %v1179 = vadd.f32 %v1175, %v1178
      %vm1180 = vweird.f32 %v1069
      %vm1181 = vweird.f32 %v1175
      %vm1182 = vmor %vm1180, %vm1181
      %v1183 = vsel %vm1182, %v1175, %v1179
      %v1184 = vand.u32 2147483647, %v1069
      %vm1185 = vcmp.eq.f32.partialorder %v1184, 8.507059e+37
      %v1186 = vand.u32 %v1069, 2147483648
      %v1187 = vor.u32 1.1754944e-38, %v1186
      %v1188 = vsel %vm1185, %v1187, %v1183
      %v1189 = vmul.f32 1.0, %v1188
      %v1190 = vmul.f32 %v984, %v1084
      %v1191 = vmul.f32 %v998, %v1099
      %v1192 = vmul.f32 %v1012, %v1114
      %v1193 = vmul.f32 %v1026, %v1129
      %v1194 = vmul.f32 %v986, %v1144
      %v1195 = vmul.f32 %v1000, %v1159
      %v1196 = vmul.f32 %v1014, %v1174
      %v1197 = vmul.f32 %v1028, %v1189
      %v1198 = vld [vmem:[%s6] sm:$0xf]
      %v1199 = vld [vmem:[%s6 + $0x4] sm:$0xf]
      %v1200 = vld [vmem:[%s6 + $0x8] sm:$0xf]
      %v1201 = vld [vmem:[%s6 + $0xc] sm:$0xf]
      %v1202 = vld [vmem:[%s6 + $0x10] sm:$0xf]
      %v1203 = vld [vmem:[%s6 + $0x14] sm:$0xf]
      %v1204 = vld [vmem:[%s6 + $0x18] sm:$0xf]
      %v1205 = vld [vmem:[%s6 + $0x1c] sm:$0xf]
      %v1206 = vld [vmem:[%s6 + $0x20] sm:$0xf]
      %v1207 = vld [vmem:[%s6 + $0x24] sm:$0xf]
      %v1208 = vld [vmem:[%s6 + $0x28] sm:$0xf]
      %v1209 = vld [vmem:[%s6 + $0x2c] sm:$0xf]
      %v1210 = vld [vmem:[%s6 + $0x30] sm:$0xf]
      %v1211 = vld [vmem:[%s6 + $0x34] sm:$0xf]
      %v1212 = vld [vmem:[%s6 + $0x38] sm:$0xf]
      %v1213 = vld [vmem:[%s6 + $0x3c] sm:$0xf]
      %v1214 = vld [vmem:[%s6 + $0x40] sm:$0xf]
      %v1215 = vld [vmem:[%s6 + $0x44] sm:$0xf]
      %v1216 = vld [vmem:[%s6 + $0x48] sm:$0xf]
      %v1217 = vld [vmem:[%s6 + $0x4c] sm:$0xf]
      %v1218 = vld [vmem:[%s6 + $0x50] sm:$0xf]
      %v1219 = vld [vmem:[%s6 + $0x54] sm:$0xf]
      %v1220 = vld [vmem:[%s6 + $0x58] sm:$0xf]
      %v1221 = vld [vmem:[%s6 + $0x5c] sm:$0xf]
      %v1222 = vld [vmem:[%s6 + $0x60] sm:$0xf]
      %v1223 = vld [vmem:[%s6 + $0x64] sm:$0xf]
      %v1224 = vld [vmem:[%s6 + $0x68] sm:$0xf]
      %v1225 = vld [vmem:[%s6 + $0x6c] sm:$0xf]
      %v1226 = vld [vmem:[%s6 + $0x70] sm:$0xf]
      %v1227 = vld [vmem:[%s6 + $0x74] sm:$0xf]
      %v1228 = vld [vmem:[%s6 + $0x78] sm:$0xf]
      %v1229 = vld [vmem:[%s6 + $0x7c] sm:$0xf]
      %v1230 = vld [vmem:[%s6 + $0x80] sm:$0xf]
      %v1231 = vld [vmem:[%s6 + $0x84] sm:$0xf]
      %v1232 = vld [vmem:[%s6 + $0x88] sm:$0xf]
      %v1233 = vld [vmem:[%s6 + $0x8c] sm:$0xf]
      %v1234 = vld [vmem:[%s6 + $0x90] sm:$0xf]
      %v1235 = vld [vmem:[%s6 + $0x94] sm:$0xf]
      %v1236 = vld [vmem:[%s6 + $0x98] sm:$0xf]
      %v1237 = vld [vmem:[%s6 + $0x9c] sm:$0xf]
      %v1238 = vld [vmem:[%s6 + $0xa0] sm:$0xf]
      %v1239 = vld [vmem:[%s6 + $0xa4] sm:$0xf]
      %v1240 = vld [vmem:[%s6 + $0xa8] sm:$0xf]
      %v1241 = vld [vmem:[%s6 + $0xac] sm:$0xf]
      %v1242 = vld [vmem:[%s6 + $0xb0] sm:$0xf]
      %v1243 = vld [vmem:[%s6 + $0xb4] sm:$0xf]
      %v1244 = vld [vmem:[%s6 + $0xb8] sm:$0xf]
      %v1245 = vld [vmem:[%s6 + $0xbc] sm:$0xf]
      %v1246 = vld [vmem:[%s6 + $0xc0] sm:$0xf]
      %v1247 = vld [vmem:[%s6 + $0xc4] sm:$0xf]
      %v1248 = vld [vmem:[%s6 + $0xc8] sm:$0xf]
      %v1249 = vld [vmem:[%s6 + $0xcc] sm:$0xf]
      %v1250 = vld [vmem:[%s6 + $0xd0] sm:$0xf]
      %v1251 = vld [vmem:[%s6 + $0xd4] sm:$0xf]
      %v1252 = vld [vmem:[%s6 + $0xd8] sm:$0xf]
      %v1253 = vld [vmem:[%s6 + $0xdc] sm:$0xf]
      %v1254 = vld [vmem:[%s6 + $0xe0] sm:$0xf]
      %v1255 = vld [vmem:[%s6 + $0xe4] sm:$0xf]
      %v1256 = vld [vmem:[%s6 + $0xe8] sm:$0xf]
      %v1257 = vld [vmem:[%s6 + $0xec] sm:$0xf]
      %v1258 = vld [vmem:[%s6 + $0xf0] sm:$0xf]
      %v1259 = vld [vmem:[%s6 + $0xf4] sm:$0xf]
      %v1260 = vld [vmem:[%s6 + $0xf8] sm:$0xf]
      %v1261 = vld [vmem:[%s6 + $0xfc] sm:$0xf]
      %v1262 = vpack.c.bf16 %v1194, %v1190
      %v1263 = vpack.c.bf16 %v1195, %v1191
      %v1264 = vpack.c.bf16 %v1196, %v1192
      %v1265 = vpack.c.bf16 %v1197, %v1193
      %v1266 = vperm.slane %v417, 0
      %v1331 = vunpack.c.l.b16 %v1198
      %v1332 = vunpack.c.l.b16 %v1199
      %v1333 = vunpack.c.l.b16 %v1200
      %v1334 = vunpack.c.l.b16 %v1201
      %v1335 = vunpack.c.l.b16 %v1202
      %v1336 = vunpack.c.l.b16 %v1203
      %v1337 = vunpack.c.l.b16 %v1204
      %v1338 = vunpack.c.l.b16 %v1205
      %v1339 = vunpack.c.l.b16 %v1206
      %v1340 = vunpack.c.l.b16 %v1207
      %v1341 = vunpack.c.l.b16 %v1208
      %v1342 = vunpack.c.l.b16 %v1209
      %v1343 = vunpack.c.l.b16 %v1210
      %v1344 = vunpack.c.l.b16 %v1211
      %v1345 = vunpack.c.l.b16 %v1212
      %v1346 = vunpack.c.l.b16 %v1213
      %v1347 = vunpack.c.l.b16 %v1214
      %v1348 = vunpack.c.l.b16 %v1215
      %v1349 = vunpack.c.l.b16 %v1216
      %v1350 = vunpack.c.l.b16 %v1217
      %v1351 = vunpack.c.l.b16 %v1218
      %v1352 = vunpack.c.l.b16 %v1219
      %v1353 = vunpack.c.l.b16 %v1220
      %v1354 = vunpack.c.l.b16 %v1221
      %v1355 = vunpack.c.l.b16 %v1222
      %v1356 = vunpack.c.l.b16 %v1223
      %v1357 = vunpack.c.l.b16 %v1224
      %v1358 = vunpack.c.l.b16 %v1225
      %v1359 = vunpack.c.l.b16 %v1226
      %v1360 = vunpack.c.l.b16 %v1227
      %v1361 = vunpack.c.l.b16 %v1228
      %v1362 = vunpack.c.l.b16 %v1229
      %v1363 = vunpack.c.l.b16 %v1230
      %v1364 = vunpack.c.l.b16 %v1231
      %v1365 = vunpack.c.l.b16 %v1232
      %v1366 = vunpack.c.l.b16 %v1233
      %v1367 = vunpack.c.l.b16 %v1234
      %v1368 = vunpack.c.l.b16 %v1235
      %v1369 = vunpack.c.l.b16 %v1236
      %v1370 = vunpack.c.l.b16 %v1237
      %v1371 = vunpack.c.l.b16 %v1238
      %v1372 = vunpack.c.l.b16 %v1239
      %v1373 = vunpack.c.l.b16 %v1240
      %v1374 = vunpack.c.l.b16 %v1241
      %v1375 = vunpack.c.l.b16 %v1242
      %v1376 = vunpack.c.l.b16 %v1243
      %v1377 = vunpack.c.l.b16 %v1244
      %v1378 = vunpack.c.l.b16 %v1245
      %v1379 = vunpack.c.l.b16 %v1246
      %v1380 = vunpack.c.l.b16 %v1247
      %v1381 = vunpack.c.l.b16 %v1248
      %v1382 = vunpack.c.l.b16 %v1249
      %v1383 = vunpack.c.l.b16 %v1250
      %v1384 = vunpack.c.l.b16 %v1251
      %v1385 = vunpack.c.l.b16 %v1252
      %v1386 = vunpack.c.l.b16 %v1253
      %v1387 = vunpack.c.l.b16 %v1254
      %v1388 = vunpack.c.l.b16 %v1255
      %v1389 = vunpack.c.l.b16 %v1256
      %v1390 = vunpack.c.l.b16 %v1257
      %v1391 = vunpack.c.l.b16 %v1258
      %v1392 = vunpack.c.l.b16 %v1259
      %v1393 = vunpack.c.l.b16 %v1260
      %v1394 = vunpack.c.l.b16 %v1261
      %v1395 = vpack.c.b16 %v1332, %v1331
      %v1396 = vpack.c.b16 %v1334, %v1333
      %v1397 = vpack.c.b16 %v1336, %v1335
      %v1398 = vpack.c.b16 %v1338, %v1337
      %v1399 = vpack.c.b16 %v1340, %v1339
      %v1400 = vpack.c.b16 %v1342, %v1341
      %v1401 = vpack.c.b16 %v1344, %v1343
      %v1402 = vpack.c.b16 %v1346, %v1345
      %v1403 = vpack.c.b16 %v1348, %v1347
      %v1404 = vpack.c.b16 %v1350, %v1349
      %v1405 = vpack.c.b16 %v1352, %v1351
      %v1406 = vpack.c.b16 %v1354, %v1353
      %v1407 = vpack.c.b16 %v1356, %v1355
      %v1408 = vpack.c.b16 %v1358, %v1357
      %v1409 = vpack.c.b16 %v1360, %v1359
      %v1410 = vpack.c.b16 %v1362, %v1361
      %v1411 = vpack.c.b16 %v1364, %v1363
      %v1412 = vpack.c.b16 %v1366, %v1365
      %v1413 = vpack.c.b16 %v1368, %v1367
      %v1414 = vpack.c.b16 %v1370, %v1369
      %v1415 = vpack.c.b16 %v1372, %v1371
      %v1416 = vpack.c.b16 %v1374, %v1373
      %v1417 = vpack.c.b16 %v1376, %v1375
      %v1418 = vpack.c.b16 %v1378, %v1377
      %v1419 = vpack.c.b16 %v1380, %v1379
      %v1420 = vpack.c.b16 %v1382, %v1381
      %v1421 = vpack.c.b16 %v1384, %v1383
      %v1422 = vpack.c.b16 %v1386, %v1385
      %v1423 = vpack.c.b16 %v1388, %v1387
      %v1424 = vpack.c.b16 %v1390, %v1389
      %v1425 = vpack.c.b16 %v1392, %v1391
      %v1426 = vpack.c.b16 %v1394, %v1393
      %1459 = vmatpush.bf16.msra.mxu0 %v1402
      %1460 = vmatpush.bf16.msra.mxu0 %v1401
      %1461 = vmatpush.bf16.msra.mxu0 %v1400
      %1462 = vmatpush.bf16.msra.mxu0 %v1399
      %1463 = vmatpush.bf16.msra.mxu0 %v1398
      %1464 = vmatpush.bf16.msra.mxu0 %v1397
      %1465 = vmatpush.bf16.msra.mxu0 %v1396
      %1466 = vmatpush.bf16.msra.mxu0 %v1395
      %1467 = vmatmul.bf16.gmra.mxu0 %v1262
      %v1468 = vpop.f32.mrf.mxu0
      %v1469 = vadd.f32 %v1266, %v1468
      %v1470 = vpop.f32.mrf.mxu0
      %v1471 = vadd.f32 %v1266, %v1470
      %1472 = vdwg.mxu0
      %1473 = vmatpush.bf16.msra.mxu0 %v1410
      %1474 = vmatpush.bf16.msra.mxu0 %v1409
      %1475 = vmatpush.bf16.msra.mxu0 %v1408
      %1476 = vmatpush.bf16.msra.mxu0 %v1407
      %1477 = vmatpush.bf16.msra.mxu0 %v1406
      %1478 = vmatpush.bf16.msra.mxu0 %v1405
      %1479 = vmatpush.bf16.msra.mxu0 %v1404
      %1480 = vmatpush.bf16.msra.mxu0 %v1403
      %1481 = vmatmul.bf16.gmra.mxu0 %v1263
      %v1482 = vpop.f32.mrf.mxu0
      %v1483 = vadd.f32 %v1469, %v1482
      %v1484 = vpop.f32.mrf.mxu0
      %v1485 = vadd.f32 %v1471, %v1484
      %1486 = vdwg.mxu0
      %1487 = vmatpush.bf16.msra.mxu0 %v1418
      %1488 = vmatpush.bf16.msra.mxu0 %v1417
      %1489 = vmatpush.bf16.msra.mxu0 %v1416
      %1490 = vmatpush.bf16.msra.mxu0 %v1415
      %1491 = vmatpush.bf16.msra.mxu0 %v1414
      %1492 = vmatpush.bf16.msra.mxu0 %v1413
      %1493 = vmatpush.bf16.msra.mxu0 %v1412
      %1494 = vmatpush.bf16.msra.mxu0 %v1411
      %1495 = vmatmul.bf16.gmra.mxu0 %v1264
      %v1496 = vpop.f32.mrf.mxu0
      %v1497 = vadd.f32 %v1483, %v1496
      %v1498 = vpop.f32.mrf.mxu0
      %v1499 = vadd.f32 %v1485, %v1498
      %1500 = vdwg.mxu0
      %1501 = vmatpush.bf16.msra.mxu0 %v1426
      %1502 = vmatpush.bf16.msra.mxu0 %v1425
      %1503 = vmatpush.bf16.msra.mxu0 %v1424
      %1504 = vmatpush.bf16.msra.mxu0 %v1423
      %1505 = vmatpush.bf16.msra.mxu0 %v1422
      %1506 = vmatpush.bf16.msra.mxu0 %v1421
      %1507 = vmatpush.bf16.msra.mxu0 %v1420
      %1508 = vmatpush.bf16.msra.mxu0 %v1419
      %1509 = vmatmul.bf16.gmra.mxu0 %v1265
      %v1510 = vpop.f32.mrf.mxu0
      %v1511 = vadd.f32 %v1497, %v1510
      %v1512 = vpop.f32.mrf.mxu0
      %v1513 = vadd.f32 %v1499, %v1512
      %1514 = vdwg.mxu0
      %v1515 = vadd.f32 %v723, %v1511
      %v1516 = vadd.f32 %v724, %v1513
      %1517 = vadd.xlane.f32.xlu0 %v1515
      %v1518 = vpop.xlane.xlu0 %1517
      %1519 = vadd.xlane.f32.xlu0 %v1516
      %v1520 = vpop.xlane.xlu0 %1519
      %v1521 = vmul.f32 %v1518, %v600
      %v1522 = vmul.f32 %v1520, %v600
      %v1523 = vsub.f32 %v1515, %v1521
      %v1524 = vsub.f32 %v1516, %v1522
      %v1525 = vmul.f32 %v1523, %v1523
      %v1526 = vmul.f32 %v1524, %v1524
      %1527 = vadd.xlane.f32.xlu0 %v1525
      %v1528 = vpop.xlane.xlu0 %1527
      %1529 = vadd.xlane.f32.xlu0 %v1526
      %v1530 = vpop.xlane.xlu0 %1529
      %v1531 = vmul.f32 %v1528, %v600
      %v1532 = vmul.f32 %v1530, %v600
      %v1533 = vadd.f32 %v1531, 1e-05
      %v1534 = vadd.f32 %v1532, 1e-05
      %v1535 = vrsqrt.pop %v1533
      %v1536 = vmul.f32 %v1535, %v1533
      %v1537 = vmul.f32 %v1536, %v1535
      %v1538 = vmul.f32 0.5, %v1537
      %v1539 = vsub.f32 1.5, %v1538
      %v1540 = vmul.f32 %v1535, %v1539
      %vm1541 = vweird.f32 %v1533
      %vm1542 = vweird.f32 %v1535
      %vm1543 = vmor %vm1541, %vm1542
      %v1544 = vsel %vm1543, %v1535, %v1540
      %v1545 = vrsqrt.pop %v1534
      %v1546 = vmul.f32 %v1545, %v1534
      %v1547 = vmul.f32 %v1546, %v1545
      %v1548 = vmul.f32 0.5, %v1547
      %v1549 = vsub.f32 1.5, %v1548
      %v1550 = vmul.f32 %v1545, %v1549
      %vm1551 = vweird.f32 %v1534
      %vm1552 = vweird.f32 %v1545
      %vm1553 = vmor %vm1551, %vm1552
      %v1554 = vsel %vm1553, %v1545, %v1550
      %v1555 = vmul.f32 %v1523, %v1544
      %v1556 = vmul.f32 %v1524, %v1554
      %v1557 = vperm.slane %v418, 0
      %v1558 = vmul.f32 %v1555, %v1557
      %v1559 = vmul.f32 %v1556, %v1557
      %v1560 = vperm.slane %v419, 0
      %v1561 = vadd.f32 %v1558, %v1560
      %v1562 = vadd.f32 %v1559, %v1560
      %v1563 = vld [vmem:[%s7] sm:$0xf]
      %v1564 = vld [vmem:[%s7 + $0x4] sm:$0xf]
      %v1565 = vld [vmem:[%s7 + $0x8] sm:$0xf]
      %v1566 = vld [vmem:[%s7 + $0xc] sm:$0xf]
      %v1567 = vld [vmem:[%s7 + $0x10] sm:$0xf]
      %v1568 = vld [vmem:[%s7 + $0x14] sm:$0xf]
      %v1569 = vld [vmem:[%s7 + $0x18] sm:$0xf]
      %v1570 = vld [vmem:[%s7 + $0x1c] sm:$0xf]
      %v1571 = vld [vmem:[%s7 + $0x20] sm:$0xf]
      %v1572 = vld [vmem:[%s7 + $0x24] sm:$0xf]
      %v1573 = vld [vmem:[%s7 + $0x28] sm:$0xf]
      %v1574 = vld [vmem:[%s7 + $0x2c] sm:$0xf]
      %v1575 = vld [vmem:[%s7 + $0x30] sm:$0xf]
      %v1576 = vld [vmem:[%s7 + $0x34] sm:$0xf]
      %v1577 = vld [vmem:[%s7 + $0x38] sm:$0xf]
      %v1578 = vld [vmem:[%s7 + $0x3c] sm:$0xf]
      %v1579 = vpack.c.bf16 %v1562, %v1561
      %v1596 = vunpack.c.l.b16 %v1563
      %v1597 = vunpack.c.l.b16 %v1564
      %v1598 = vunpack.c.l.b16 %v1565
      %v1599 = vunpack.c.l.b16 %v1566
      %v1600 = vunpack.c.l.b16 %v1567
      %v1601 = vunpack.c.l.b16 %v1568
      %v1602 = vunpack.c.l.b16 %v1569
      %v1603 = vunpack.c.l.b16 %v1570
      %v1604 = vunpack.c.l.b16 %v1571
      %v1605 = vunpack.c.l.b16 %v1572
      %v1606 = vunpack.c.l.b16 %v1573
      %v1607 = vunpack.c.l.b16 %v1574
      %v1608 = vunpack.c.l.b16 %v1575
      %v1609 = vunpack.c.l.b16 %v1576
      %v1610 = vunpack.c.l.b16 %v1577
      %v1611 = vunpack.c.l.b16 %v1578
      %v1612 = vpack.c.b16 %v1597, %v1596
      %v1613 = vpack.c.b16 %v1599, %v1598
      %v1614 = vpack.c.b16 %v1601, %v1600
      %v1615 = vpack.c.b16 %v1603, %v1602
      %v1616 = vpack.c.b16 %v1605, %v1604
      %v1617 = vpack.c.b16 %v1607, %v1606
      %v1618 = vpack.c.b16 %v1609, %v1608
      %v1619 = vpack.c.b16 %v1611, %v1610
      %1628 = vmatpush.bf16.msra.mxu0 %v1619
      %1629 = vmatpush.bf16.msra.mxu0 %v1618
      %1630 = vmatpush.bf16.msra.mxu0 %v1617
      %1631 = vmatpush.bf16.msra.mxu0 %v1616
      %1632 = vmatpush.bf16.msra.mxu0 %v1615
      %1633 = vmatpush.bf16.msra.mxu0 %v1614
      %1634 = vmatpush.bf16.msra.mxu0 %v1613
      %1635 = vmatpush.bf16.msra.mxu0 %v1612
      %1636 = vmatmul.bf16.gmra.mxu0 %v1579
      %v1637 = vpop.f32.mrf.mxu0
      %v1638 = vadd.f32 0.0, %v1637
      %v1639 = vpop.f32.mrf.mxu0
      %v1640 = vadd.f32 0.0, %v1639
      %1641 = vdwg.mxu0
      %v1642 = vmul.f32 %v1638, %v1638
      %v1643 = vmul.f32 %v1640, %v1640
      %1644 = vadd.xlane.f32.xlu0 %v1642
      %v1645 = vpop.xlane.xlu0 %1644
      %1646 = vadd.xlane.f32.xlu0 %v1643
      %v1647 = vpop.xlane.xlu0 %1646
      %v1648 = vadd.f32 %v1645, 1e-12
      %v1649 = vadd.f32 %v1647, 1e-12
      %v1650 = vrsqrt.pop %v1648
      %v1651 = vmul.f32 %v1650, %v1648
      %v1652 = vmul.f32 %v1651, %v1650
      %v1653 = vmul.f32 0.5, %v1652
      %v1654 = vsub.f32 1.5, %v1653
      %v1655 = vmul.f32 %v1650, %v1654
      %vm1656 = vweird.f32 %v1648
      %vm1657 = vweird.f32 %v1650
      %vm1658 = vmor %vm1656, %vm1657
      %v1659 = vsel %vm1658, %v1650, %v1655
      %v1660 = vrsqrt.pop %v1649
      %v1661 = vmul.f32 %v1660, %v1649
      %v1662 = vmul.f32 %v1661, %v1660
      %v1663 = vmul.f32 0.5, %v1662
      %v1664 = vsub.f32 1.5, %v1663
      %v1665 = vmul.f32 %v1660, %v1664
      %vm1666 = vweird.f32 %v1649
      %vm1667 = vweird.f32 %v1660
      %vm1668 = vmor %vm1666, %vm1667
      %v1669 = vsel %vm1668, %v1660, %v1665
      %v1670 = vmul.f32 %v1638, %v1659
      %v1671 = vmul.f32 %v1640, %v1669
      %v1672 = vld [vmem:[%s8] sm:$0xf]
      %v1673 = vld [vmem:[%s8 + $0x4] sm:$0xf]
      %v1674 = vld [vmem:[%s8 + $0x8] sm:$0xf]
      %v1675 = vld [vmem:[%s8 + $0xc] sm:$0xf]
      %v1676 = vld [vmem:[%s8 + $0x10] sm:$0xf]
      %v1677 = vld [vmem:[%s8 + $0x14] sm:$0xf]
      %v1678 = vld [vmem:[%s8 + $0x18] sm:$0xf]
      %v1679 = vld [vmem:[%s8 + $0x1c] sm:$0xf]
      %v1680 = vld [vmem:[%s8 + $0x20] sm:$0xf]
      %v1681 = vld [vmem:[%s8 + $0x24] sm:$0xf]
      %v1682 = vld [vmem:[%s8 + $0x28] sm:$0xf]
      %v1683 = vld [vmem:[%s8 + $0x2c] sm:$0xf]
      %v1684 = vld [vmem:[%s8 + $0x30] sm:$0xf]
      %v1685 = vld [vmem:[%s8 + $0x34] sm:$0xf]
      %v1686 = vld [vmem:[%s8 + $0x38] sm:$0xf]
      %v1687 = vld [vmem:[%s8 + $0x3c] sm:$0xf]
      %v1688 = vpack.c.bf16 %v1671, %v1670
      %v1705 = vunpack.c.l.b16 %v1672
      %v1706 = vunpack.c.l.b16 %v1673
      %v1707 = vunpack.c.l.b16 %v1674
      %v1708 = vunpack.c.l.b16 %v1675
      %v1709 = vunpack.c.l.b16 %v1676
      %v1710 = vunpack.c.l.b16 %v1677
      %v1711 = vunpack.c.l.b16 %v1678
      %v1712 = vunpack.c.l.b16 %v1679
      %v1713 = vunpack.c.l.b16 %v1680
      %v1714 = vunpack.c.l.b16 %v1681
      %v1715 = vunpack.c.l.b16 %v1682
      %v1716 = vunpack.c.l.b16 %v1683
      %v1717 = vunpack.c.l.b16 %v1684
      %v1718 = vunpack.c.l.b16 %v1685
      %v1719 = vunpack.c.l.b16 %v1686
      %v1720 = vunpack.c.l.b16 %v1687
      %v1721 = vpack.c.b16 %v1706, %v1705
      %v1722 = vpack.c.b16 %v1708, %v1707
      %v1723 = vpack.c.b16 %v1710, %v1709
      %v1724 = vpack.c.b16 %v1712, %v1711
      %v1725 = vpack.c.b16 %v1714, %v1713
      %v1726 = vpack.c.b16 %v1716, %v1715
      %v1727 = vpack.c.b16 %v1718, %v1717
      %v1728 = vpack.c.b16 %v1720, %v1719
      %1737 = vmatpush.bf16.msra.mxu0 %v1728
      %1738 = vmatpush.bf16.msra.mxu0 %v1727
      %1739 = vmatpush.bf16.msra.mxu0 %v1726
      %1740 = vmatpush.bf16.msra.mxu0 %v1725
      %1741 = vmatpush.bf16.msra.mxu0 %v1724
      %1742 = vmatpush.bf16.msra.mxu0 %v1723
      %1743 = vmatpush.bf16.msra.mxu0 %v1722
      %1744 = vmatpush.bf16.msra.mxu0 %v1721
      %1745 = vmatmul.bf16.gmra.mxu0 %v1688
      %v1746 = vpop.f32.mrf.mxu0
      %v1747 = vadd.f32 0.0, %v1746
      %v1748 = vpop.f32.mrf.mxu0
      %v1749 = vadd.f32 0.0, %v1748
      %1750 = vdwg.mxu0
      %v1751 = vpack.c.bf16 %v1747, %v1747
      %v1752 = vpack.c.bf16 %v1749, %v1749
      %1753 = vst [vmem:[%s409] sm:$0xf] %v1751
      %1754 = vst [vmem:[%s409 + $0x4] sm:$0xf] %v1752
      %s1755 = sadd.s32 %s25, %s26
      %s1756 = smul.u32 2, %s1755
      %p1757 = scmp.lt.s32.totalorder %s1756, 3
      %s1758 = scalar_select %p1757, %s1756, 3
      %s1759 = smul.addr %s1758, 4
      %s1760 = scalar_lea.vmem %s10, %s1759
      // Predicated region
      $region61: #{maskclip_forward.1} parent=59 // pred_check
        %p1761 = pneg %p275
      $region62: #{maskclip_forward.1} parent=59 // pred_check_branch
        %1763 = sbr.rel (%p1761) target = $region64
      $region63: #{maskclip_forward.1} parent=59 // pred_region
        %s1764 = sadd.s32 %s25, %s26
        %s1765 = smul.u32 2, %s1764
      $region64: #{maskclip_forward.1} parent=59 // pred_fallthru
        _
    $region60: #{maskclip_forward.1} parent=5 // pred_fallthru
      _
    %p1766 = scmp.le.s32.totalorder 2, %s16
    // Predicated region
    $region65: #{maskclip_forward.1} parent=5 // pred_check
      %p1767 = pneg %p1766
    $region66: #{maskclip_forward.1} parent=5 // pred_check_branch
      %1769 = sbr.rel (%p1767) target = $region68
    $region67: #{maskclip_forward.1} parent=5 // pred_region
      %s1770 = ssub.s32 %s16, 2
      // Predicated region
      $region69: #{maskclip_forward.1} parent=67 // pred_check
        %p1771 = pneg %p281
      $region70: #{maskclip_forward.1} parent=67 // pred_check_branch
        %1773 = sbr.rel (%p1771) target = $region72
      $region71: #{maskclip_forward.1} parent=67 // pred_region
        %s1774 = sadd.s32 %s27, %s28
        %s1775 = smul.u32 2, %s1774
        %p1776 = scmp.lt.s32.totalorder %s1775, 3
        %s1777 = scalar_select %p1776, %s1775, 3
        %s1778 = smul.addr %s1777, 4
        %s1779 = scalar_lea.vmem %s10, %s1778
      $region72: #{maskclip_forward.1} parent=67 // pred_fallthru
        _
    $region68: #{maskclip_forward.1} parent=5 // pred_fallthru
      _
  $region6: #{maskclip_forward.1} parent=0 // loop_footer
    %s20 = sadd.s32 1, %s16
  $region7: #{maskclip_forward.1} parent=0 // loop_footer_branch
    %15 = sbr.rel target = $region3
  $region8: #{maskclip_forward.1} parent=0 // loop_exit
    _

</llo_original>
